<compile_context>
chip_gen: v7x
topology: tpu7x:2x2x1
jax: 0.10.0
libtpu: 0.0.40
codegen_flags: <defaults>
</compile_context>

<pallas_src>
import math
import functools

import jax
import jax.numpy as jnp
from jax import lax
from jax.experimental import pallas as pl
from jax.experimental.pallas import tpu as pltpu


def _causal_attn_kernel(q_ref, k_ref, v_ref, o_ref, w_ref,
                        s_buf, m_scr, l_scr, acc_scr,
                        *, scale, tq, ck, heads, head_dim):
    # Block shapes (one batch element, one query tile, all heads):
    #   q_ref: (1, H, tq, Dh)   k_ref/v_ref: (1, H, S, Dh)
    #   o_ref: (1, tq, W)  (lane-dense, heads merged)
    #   w_ref: (1, tq, S)  (head-averaged attention weights)
    # Scratch: s_buf (H, tq, S) f32, m/l (H, tq, 1) f32, acc (H, tq, Dh) f32.
    H, Dh = heads, head_dim
    S = k_ref.shape[2]
    nk = S // ck                      # chooser guarantees ck == S or ck | S
    q_start = pl.program_id(1) * tq
    q_last = q_start + (tq - 1)       # last query row of this tile

    # Scale folded into Q: H*tq*Dh multiplies instead of H*tq*S on the scores.
    q = q_ref[0] * scale              # (H, tq, Dh), input dtype

    # Reset per-grid-step accumulators (scratch persists across grid steps).
    m_scr[...] = jnp.full(m_scr.shape, -jnp.inf, m_scr.dtype)
    l_scr[...] = jnp.zeros(l_scr.shape, l_scr.dtype)
    acc_scr[...] = jnp.zeros(acc_scr.shape, acc_scr.dtype)

    # ---- Pass 1: scores for causally-reachable key chunks + running row max.
    for c in range(nk):
        cs = c * ck

        @pl.when(cs <= q_last)
        def _(cs=cs):
            k_c = k_ref[0, :, cs:cs + ck, :]                     # (H, ck, Dh)
            s_c = jnp.einsum("hqd,hkd->hqk", q, k_c,
                             preferred_element_type=jnp.float32)  # (H, tq, ck)
            row = lax.broadcasted_iota(jnp.int32, (tq, ck), 0) + q_start
            col = lax.broadcasted_iota(jnp.int32, (tq, ck), 1) + cs
            s_c = jnp.where((col <= row)[None], s_c, -jnp.inf)
            s_buf[:, :, cs:cs + ck] = s_c
            m_scr[...] = jnp.maximum(
                m_scr[...], jnp.max(s_c, axis=-1, keepdims=True))

    # ---- Pass 2: exp, row sums and PV accumulation on active chunks only.
    for c in range(nk):
        cs = c * ck

        @pl.when(cs <= q_last)
        def _(cs=cs):
            p_c = jnp.exp(s_buf[:, :, cs:cs + ck] - m_scr[...])  # (H, tq, ck)
            l_scr[...] += jnp.sum(p_c, axis=-1, keepdims=True)
            v_c = v_ref[0, :, cs:cs + ck, :]                     # (H, ck, Dh)
            acc_scr[...] += jnp.einsum(
                "hqk,hkd->hqd", p_c.astype(v_c.dtype), v_c,
                preferred_element_type=jnp.float32)
            s_buf[:, :, cs:cs + ck] = p_c    # keep p for the weights pass

    inv_l = pl.reciprocal(l_scr[...], approx=False)              # (H, tq, 1)

    # ---- Pass 3: normalized, head-averaged attention weights.
    for c in range(nk):
        cs = c * ck

        @pl.when(cs <= q_last)
        def _(cs=cs):
            w_c = jnp.mean(s_buf[:, :, cs:cs + ck] * inv_l, axis=0)  # (tq, ck)
            w_ref[0, :, cs:cs + ck] = w_c.astype(w_ref.dtype)

        @pl.when(cs > q_last)
        def _(cs=cs):
            w_ref[0, :, cs:cs + ck] = jnp.zeros((tq, ck), w_ref.dtype)

    # ---- Output: lane-dense (tq, W) block, heads merged on the last dim.
    # Per-head stores are VMEM-internal; the HBM writeback is one wide slab.
    o = (acc_scr[...] * inv_l).astype(o_ref.dtype)               # (H, tq, Dh)
    for h in range(H):
        o_ref[0, :, h * Dh:(h + 1) * Dh] = o[h]


def _tpu_generation():
    try:
        kind = jax.devices()[0].device_kind.lower()
    except Exception:
        kind = ""
    if "v5" in kind:
        return 5
    if "v6" in kind:
        return 6
    return 7  # unknown / newest: assume the tightest VMEM / widest MXU


def _vmem_capacity_bytes():
    try:
        return int(pltpu.get_tpu_info().vmem_capacity_bytes)
    except Exception:
        return 64 * 1024 * 1024  # v7x per-TC capacity; conservative default


def _choose_tiles(S, H, Dh, W, in_itemsize, w_itemsize):
    """Generation-aware query tile and key chunk sizes with full VMEM accounting."""
    gen = _tpu_generation()
    cap_tq = 128 if gen == 5 else 256       # match 128-wide MXU on v5e, 256 on v6e/v7x
    ck_pref = 128 if gen == 5 else 256

    # Key chunk: lane-aligned divisor of S, else the whole key axis.
    ck = S
    for cand in (ck_pref, 128):
        if S > cand and S % cand == 0:
            ck = cand
            break

    budget = int(_vmem_capacity_bytes() * 0.75)
    sub = 8 if in_itemsize >= 4 else (16 if in_itemsize == 2 else 32)

    fixed = 2 * 2 * H * S * Dh * in_itemsize        # double-buffered K and V blocks
    per_tq = (H * S * 4                             # score/probability scratch slab
              + 4 * H * ck * 4                      # per-chunk f32 temporaries
              + H * Dh * 4                          # PV accumulator scratch
              + 2 * S * w_itemsize                  # double-buffered weights block
              + 2 * H * Dh * in_itemsize            # double-buffered Q block
              + 2 * W * in_itemsize)                # double-buffered O block
    avail = budget - fixed
    # TODO(synk): if K/V alone exceed the budget (huge H*S), stream K/V in a
    # flash-style manual pipeline instead of holding the full key axis resident.
    tq = avail // per_tq if avail > 0 else sub
    tq = int(max(sub, min(cap_tq, tq)))
    if tq >= S:
        tq = S                                      # full axis: always legal
    else:
        tq = max(sub, (tq // sub) * sub)
        tq = min(tq, S)
    return tq, ck


def pallas_causal_mha_core(q, k, v, *, weights_dtype=jnp.float32):
    """q, k, v: (B, H, S, Dh).
    Returns:
      out (B, S, H*Dh) in the input dtype (heads merged, lane-dense),
      head-averaged attention weights (B, S, S) in weights_dtype."""
    B, H, S, Dh = q.shape
    W = H * Dh
    scale = 1.0 / math.sqrt(Dh)
    tq, ck = _choose_tiles(S, H, Dh, W, q.dtype.itemsize,
                           jnp.dtype(weights_dtype).itemsize)

    kernel = functools.partial(_causal_attn_kernel, scale=scale, tq=tq, ck=ck,
                               heads=H, head_dim=Dh)

    q_spec = pl.BlockSpec((1, H, tq, Dh), lambda b, i: (b, 0, i, 0))
    kv_spec = pl.BlockSpec((1, H, S, Dh), lambda b, i: (b, 0, 0, 0))
    o_spec = pl.BlockSpec((1, tq, W), lambda b, i: (b, i, 0))
    w_spec = pl.BlockSpec((1, tq, S), lambda b, i: (b, i, 0))

    out_shape = (
        jax.ShapeDtypeStruct((B, S, W), q.dtype),
        jax.ShapeDtypeStruct((B, S, S), weights_dtype),
    )
    vmem_limit = min(int(_vmem_capacity_bytes() * 0.9), 128 * 1024 * 1024)

    return pl.pallas_call(
        kernel,
        out_shape=out_shape,
        # Batch leading + parallel: on a two-TensorCore chip the batch is what
        # gets sharded, keeping each core's K/V block resident across q tiles.
        grid=(B, pl.cdiv(S, tq)),
        in_specs=[q_spec, kv_spec, kv_spec],
        out_specs=(o_spec, w_spec),
        scratch_shapes=[
            pltpu.VMEM((H, tq, S), jnp.float32),    # scores -> probabilities
            pltpu.VMEM((H, tq, 1), jnp.float32),    # running row max
            pltpu.VMEM((H, tq, 1), jnp.float32),    # row sum
            pltpu.VMEM((H, tq, Dh), jnp.float32),   # PV accumulator
        ],
        compiler_params=pltpu.CompilerParams(
            dimension_semantics=("parallel", "parallel"),
            vmem_limit_bytes=vmem_limit),
    )(q, k, v)


def init_params(key, width):
    """Deterministic parameters matching nn.MultiheadAttention shapes."""
    k1, k2 = jax.random.split(key)
    limit_in = math.sqrt(6.0 / (width + width))
    in_proj_weight = jax.random.uniform(
        k1, (3 * width, width), jnp.float32, -limit_in, limit_in)
    in_proj_bias = jnp.zeros((3 * width,), jnp.float32)
    limit_out = math.sqrt(6.0 / (width + width))
    out_proj_weight = jax.random.uniform(
        k2, (width, width), jnp.float32, -limit_out, limit_out)
    out_proj_bias = jnp.zeros((width,), jnp.float32)
    return dict(
        in_proj_weight=in_proj_weight,
        in_proj_bias=in_proj_bias,
        out_proj_weight=out_proj_weight,
        out_proj_bias=out_proj_bias,
    )


def relational_attention_forward(params, x, heads, use_vals=True, rng=None):
    """
    Mirrors RelationalAttention.forward with use_vals=True (V = X).  Returns
    (attn_output, attn_weights) exactly like nn.MultiheadAttention(
    batch_first=True, need_weights=True, average_attn_weights=True) with a
    causal mask.
    """
    B, S, W = x.shape
    Dh = W // heads

    if use_vals:
        v_in = x
    else:
        # TODO(synk): torch.randn values path uses JAX PRNG instead of torch RNG.
        v_in = jax.random.normal(rng, x.shape, x.dtype)

    wq, wk, wv = jnp.split(params["in_proj_weight"], 3, axis=0)
    bq, bk, bv = jnp.split(params["in_proj_bias"], 3, axis=0)

    # Project straight into the (B, H, S, Dh) head-split layout — no explicit
    # split_heads transpose passes over the activations.
    def project(t, w_, b_):
        y = jnp.einsum("bsw,hdw->bhsd", t, w_.reshape(heads, Dh, W))
        return y + b_.reshape(1, heads, 1, Dh)

    qh = project(x, wq, bq)
    kh = project(x, wk, bk)
    vh = project(v_in, wv, bv)

    # Hot path: causal attention + fused head-mean weights in Pallas. The
    # output comes back with heads already merged lane-dense as (B, S, W).
    o, attn_weights = pallas_causal_mha_core(qh, kh, vh)

    attn_output = o @ params["out_proj_weight"].T + params["out_proj_bias"]
    return attn_output, attn_weights


def _reference_forward(params, x, heads):
    """Pure-JAX reference for correctness check."""
    B, S, W = x.shape
    Dh = W // heads
    wq, wk, wv = jnp.split(params["in_proj_weight"], 3, axis=0)
    bq, bk, bv = jnp.split(params["in_proj_bias"], 3, axis=0)
    q = (x @ wq.T + bq).reshape(B, S, heads, Dh).transpose(0, 2, 1, 3)
    k = (x @ wk.T + bk).reshape(B, S, heads, Dh).transpose(0, 2, 1, 3)
    v = (x @ wv.T + bv).reshape(B, S, heads, Dh).transpose(0, 2, 1, 3)
    s = jnp.einsum("bhqd,bhkd->bhqk", q, k) / math.sqrt(Dh)
    mask = jnp.tril(jnp.ones((S, S), bool))
    s = jnp.where(mask, s, -jnp.inf)
    w = jax.nn.softmax(s, axis=-1)
    o = jnp.einsum("bhqk,bhkd->bhqd", w, v)
    o = o.transpose(0, 2, 1, 3).reshape(B, S, W)
    out = o @ params["out_proj_weight"].T + params["out_proj_bias"]
    return out, w.mean(axis=1)


if __name__ == "__main__":
    batch, seq, width, heads = 2, 8, 32, 4

    key = jax.random.PRNGKey(0)
    k_param, k_x = jax.random.split(key)
    params = init_params(k_param, width)
    x = jax.random.normal(k_x, (batch, seq, width), jnp.float32)

    attn_out, attn_w = relational_attention_forward(params, x, heads, use_vals=True)
    attn_out = jax.block_until_ready(attn_out)
    attn_w = jax.block_until_ready(attn_w)

    ref_out, ref_w = _reference_forward(params, x, heads)
    assert jnp.allclose(attn_out, ref_out, atol=1e-4, rtol=1e-4)
    assert jnp.allclose(attn_w, ref_w, atol=1e-4, rtol=1e-4)
    assert attn_out.shape == (batch, seq, width)
    assert attn_w.shape == (batch, seq, seq)

    print("KERNEL_OK")
</pallas_src>

<mosaic_0001>
module attributes {stable_mosaic.version = 11 : i64} {
  func.func @_causal_attn_kernel(%arg0: i32, %arg1: i32, %arg2: memref<1x4x8x8xf32, #tpu.memory_space<vmem>>, %arg3: memref<1x4x8x8xf32, #tpu.memory_space<vmem>>, %arg4: memref<1x4x8x8xf32, #tpu.memory_space<vmem>>, %arg5: memref<1x8x32xf32, #tpu.memory_space<vmem>>, %arg6: memref<1x8x8xf32, #tpu.memory_space<vmem>>, %arg7: memref<4x8x8xf32, #tpu.memory_space<vmem>>, %arg8: memref<4x8x1xf32, #tpu.memory_space<vmem>>, %arg9: memref<4x8x1xf32, #tpu.memory_space<vmem>>, %arg10: memref<4x8x8xf32, #tpu.memory_space<vmem>>) attributes {dimension_semantics = [#tpu.dimension_semantics<parallel>, #tpu.dimension_semantics<parallel>], iteration_bounds = array<i64: 2, 1>, scalar_prefetch = 0 : i64, scratch_operands = 4 : i64, tpu.core_type = #tpu.core_type<tc>, window_params = [{transform_indices = @transform_0, window_bounds = array<i64: 1, 4, 8, 8>}, {transform_indices = @transform_1, window_bounds = array<i64: 1, 4, 8, 8>}, {transform_indices = @transform_2, window_bounds = array<i64: 1, 4, 8, 8>}, {transform_indices = @transform_3, window_bounds = array<i64: 1, 8, 32>}, {transform_indices = @transform_4, window_bounds = array<i64: 1, 8, 8>}]} {
    %c8_i32 = arith.constant 8 : i32
    %0 = arith.muli %arg1, %c8_i32 : i32
    %c7_i32 = arith.constant 7 : i32
    %1 = arith.addi %0, %c7_i32 : i32
    %c0 = arith.constant 0 : index
    %c0_0 = arith.constant 0 : index
    %c0_1 = arith.constant 0 : index
    %c0_2 = arith.constant 0 : index
    %2 = vector.load %arg2[%c0, %c0_0, %c0_1, %c0_2] : memref<1x4x8x8xf32, #tpu.memory_space<vmem>>, vector<1x4x8x8xf32>
    %3 = vector.shape_cast %2 : vector<1x4x8x8xf32> to vector<4x8x8xf32>
    %cst = arith.constant 0.353553385 : f32
    %4 = vector.broadcast %cst : f32 to vector<4x8x8xf32>
    %5 = arith.mulf %3, %4 : vector<4x8x8xf32>
    %cst_3 = arith.constant 0xFF800000 : f32
    %6 = vector.broadcast %cst_3 : f32 to vector<4x8x1xf32>
    %c0_4 = arith.constant 0 : index
    %c0_5 = arith.constant 0 : index
    %c0_6 = arith.constant 0 : index
    %7 = vector.load %arg8[%c0_4, %c0_5, %c0_6] : memref<4x8x1xf32, #tpu.memory_space<vmem>>, vector<4x8x1xf32>
    tpu.vector_store %arg8[%c0_4, %c0_5, %c0_6], %6 {strides = array<i32>} : memref<4x8x1xf32, #tpu.memory_space<vmem>>, vector<4x8x1xf32>,
    %cst_7 = arith.constant 0.000000e+00 : f32
    %8 = vector.broadcast %cst_7 : f32 to vector<4x8x1xf32>
    %c0_8 = arith.constant 0 : index
    %c0_9 = arith.constant 0 : index
    %c0_10 = arith.constant 0 : index
    %9 = vector.load %arg9[%c0_8, %c0_9, %c0_10] : memref<4x8x1xf32, #tpu.memory_space<vmem>>, vector<4x8x1xf32>
    tpu.vector_store %arg9[%c0_8, %c0_9, %c0_10], %8 {strides = array<i32>} : memref<4x8x1xf32, #tpu.memory_space<vmem>>, vector<4x8x1xf32>,
    %cst_11 = arith.constant 0.000000e+00 : f32
    %10 = vector.broadcast %cst_11 : f32 to vector<4x8x8xf32>
    %c0_12 = arith.constant 0 : index
    %c0_13 = arith.constant 0 : index
    %c0_14 = arith.constant 0 : index
    %11 = vector.load %arg10[%c0_12, %c0_13, %c0_14] : memref<4x8x8xf32, #tpu.memory_space<vmem>>, vector<4x8x8xf32>
    tpu.vector_store %arg10[%c0_12, %c0_13, %c0_14], %10 {strides = array<i32>} : memref<4x8x8xf32, #tpu.memory_space<vmem>>, vector<4x8x8xf32>,
    %c0_i32 = arith.constant 0 : i32
    %12 = arith.cmpi sge, %1, %c0_i32 : i32
    %13 = arith.extui %12 : i1 to i32
    %c0_i32_15 = arith.constant 0 : i32
    %14 = arith.cmpi ne, %13, %c0_i32_15 : i32
    scf.if %14 {
      %c0_37 = arith.constant 0 : index
      %c0_38 = arith.constant 0 : index
      %c0_39 = arith.constant 0 : index
      %c0_40 = arith.constant 0 : index
      %49 = vector.load %arg3[%c0_37, %c0_38, %c0_39, %c0_40] : memref<1x4x8x8xf32, #tpu.memory_space<vmem>>, vector<1x4x8x8xf32>
      %50 = vector.shape_cast %49 : vector<1x4x8x8xf32> to vector<4x8x8xf32>
      "tpu.trace_start"() <{level = 10 : i32, message = "hqd,hkd->hqk"}> : () -> ()
      %cst_41 = arith.constant dense<0.000000e+00> : vector<4x8x8xf32>
      %51 = tpu.matmul %5, %50, %cst_41 {dimension_numbers = #tpu.dot_dimension_numbers<[2], [2], [1], [1], [0, 0, 0, 1, 1, 1], [0], [0]>} : vector<4x8x8xf32>, vector<4x8x8xf32>, vector<4x8x8xf32> -> vector<4x8x8xf32>
      "tpu.trace_stop"() : () -> ()
      %52 = tpu.iota {dimensions = array<i32: 0>} : vector<8x8xi32>
      %53 = vector.broadcast %0 : i32 to vector<8x8xi32>
      %54 = arith.addi %52, %53 : vector<8x8xi32>
      %55 = tpu.iota {dimensions = array<i32: 1>} : vector<8x8xi32>
      %c0_i32_42 = arith.constant 0 : i32
      %56 = vector.broadcast %c0_i32_42 : i32 to vector<8x8xi32>
      %57 = arith.addi %55, %56 : vector<8x8xi32>
      %58 = arith.cmpi sle, %57, %54 : vector<8x8xi32>
      %59 = vector.shape_cast %58 : vector<8x8xi1> to vector<1x8x8xi1>
      %cst_43 = arith.constant 0xFF800000 : f32
      %60 = vector.shape_cast %59 : vector<1x8x8xi1> to vector<1x8x8xi1>
      %61 = vector.broadcast %60 : vector<1x8x8xi1> to vector<4x8x8xi1>
      %62 = vector.broadcast %cst_43 : f32 to vector<4x8x8xf32>
      %63 = arith.select %61, %51, %62 : vector<4x8x8xi1>, vector<4x8x8xf32>
      %c0_44 = arith.constant 0 : index
      %c0_45 = arith.constant 0 : index
      %c0_46 = arith.constant 0 : index
      %64 = vector.load %arg7[%c0_44, %c0_45, %c0_46] : memref<4x8x8xf32, #tpu.memory_space<vmem>>, vector<4x8x8xf32>
      tpu.vector_store %arg7[%c0_44, %c0_45, %c0_46], %63 {strides = array<i32>} : memref<4x8x8xf32, #tpu.memory_space<vmem>>, vector<4x8x8xf32>,
      %c0_47 = arith.constant 0 : index
      %c0_48 = arith.constant 0 : index
      %c0_49 = arith.constant 0 : index
      %65 = vector.load %arg8[%c0_47, %c0_48, %c0_49] : memref<4x8x1xf32, #tpu.memory_space<vmem>>, vector<4x8x1xf32>
      %cst_50 = arith.constant dense<0xFF800000> : vector<4x8xf32>
      %66 = vector.multi_reduction <maximumf>, %63, %cst_50 [2] : vector<4x8x8xf32> to vector<4x8xf32>
      %67 = vector.shape_cast %66 : vector<4x8xf32> to vector<4x8x1xf32>
      %68 = arith.maximumf %65, %67 : vector<4x8x1xf32>
      %c0_51 = arith.constant 0 : index
      %c0_52 = arith.constant 0 : index
      %c0_53 = arith.constant 0 : index
      %69 = vector.load %arg8[%c0_51, %c0_52, %c0_53] : memref<4x8x1xf32, #tpu.memory_space<vmem>>, vector<4x8x1xf32>
      tpu.vector_store %arg8[%c0_51, %c0_52, %c0_53], %68 {strides = array<i32>} : memref<4x8x1xf32, #tpu.memory_space<vmem>>, vector<4x8x1xf32>,
    } else {
    }
    %c0_i32_16 = arith.constant 0 : i32
    %15 = arith.cmpi sge, %1, %c0_i32_16 : i32
    %16 = arith.extui %15 : i1 to i32
    %c0_i32_17 = arith.constant 0 : i32
    %17 = arith.cmpi ne, %16, %c0_i32_17 : i32
    scf.if %17 {
      %c0_37 = arith.constant 0 : index
      %c0_38 = arith.constant 0 : index
      %c0_39 = arith.constant 0 : index
      %49 = vector.load %arg7[%c0_37, %c0_38, %c0_39] : memref<4x8x8xf32, #tpu.memory_space<vmem>>, vector<4x8x8xf32>
      %c0_40 = arith.constant 0 : index
      %c0_41 = arith.constant 0 : index
      %c0_42 = arith.constant 0 : index
      %50 = vector.load %arg8[%c0_40, %c0_41, %c0_42] : memref<4x8x1xf32, #tpu.memory_space<vmem>>, vector<4x8x1xf32>
      %51 = vector.broadcast %50 : vector<4x8x1xf32> to vector<4x8x8xf32>
      %52 = arith.subf %49, %51 : vector<4x8x8xf32>
      %53 = math.exp %52 : vector<4x8x8xf32>
      %c0_43 = arith.constant 0 : index
      %c0_44 = arith.constant 0 : index
      %c0_45 = arith.constant 0 : index
      %54 = vector.load %arg9[%c0_43, %c0_44, %c0_45] : memref<4x8x1xf32, #tpu.memory_space<vmem>>, vector<4x8x1xf32>
      %cst_46 = arith.constant dense<0.000000e+00> : vector<4x8xf32>
      %55 = vector.multi_reduction <add>, %53, %cst_46 [2] : vector<4x8x8xf32> to vector<4x8xf32>
      %56 = vector.shape_cast %55 : vector<4x8xf32> to vector<4x8x1xf32>
      %57 = arith.addf %54, %56 : vector<4x8x1xf32>
      %c0_47 = arith.constant 0 : index
      %c0_48 = arith.constant 0 : index
      %c0_49 = arith.constant 0 : index
      %58 = vector.load %arg9[%c0_47, %c0_48, %c0_49] : memref<4x8x1xf32, #tpu.memory_space<vmem>>, vector<4x8x1xf32>
      tpu.vector_store %arg9[%c0_47, %c0_48, %c0_49], %57 {strides = array<i32>} : memref<4x8x1xf32, #tpu.memory_space<vmem>>, vector<4x8x1xf32>,
      %c0_50 = arith.constant 0 : index
      %c0_51 = arith.constant 0 : index
      %c0_52 = arith.constant 0 : index
      %c0_53 = arith.constant 0 : index
      %59 = vector.load %arg4[%c0_50, %c0_51, %c0_52, %c0_53] : memref<1x4x8x8xf32, #tpu.memory_space<vmem>>, vector<1x4x8x8xf32>
      %60 = vector.shape_cast %59 : vector<1x4x8x8xf32> to vector<4x8x8xf32>
      %c0_54 = arith.constant 0 : index
      %c0_55 = arith.constant 0 : index
      %c0_56 = arith.constant 0 : index
      %61 = vector.load %arg10[%c0_54, %c0_55, %c0_56] : memref<4x8x8xf32, #tpu.memory_space<vmem>>, vector<4x8x8xf32>
      "tpu.trace_start"() <{level = 10 : i32, message = "hqk,hkd->hqd"}> : () -> ()
      %cst_57 = arith.constant dense<0.000000e+00> : vector<4x8x8xf32>
      %62 = tpu.matmul %53, %60, %cst_57 {dimension_numbers = #tpu.dot_dimension_numbers<[2], [1], [1], [2], [0, 0, 0, 1, 1, 2], [0], [0]>} : vector<4x8x8xf32>, vector<4x8x8xf32>, vector<4x8x8xf32> -> vector<4x8x8xf32>
      "tpu.trace_stop"() : () -> ()
      %63 = arith.addf %61, %62 : vector<4x8x8xf32>
      %c0_58 = arith.constant 0 : index
      %c0_59 = arith.constant 0 : index
      %c0_60 = arith.constant 0 : index
      %64 = vector.load %arg10[%c0_58, %c0_59, %c0_60] : memref<4x8x8xf32, #tpu.memory_space<vmem>>, vector<4x8x8xf32>
      tpu.vector_store %arg10[%c0_58, %c0_59, %c0_60], %63 {strides = array<i32>} : memref<4x8x8xf32, #tpu.memory_space<vmem>>, vector<4x8x8xf32>,
      %c0_61 = arith.constant 0 : index
      %c0_62 = arith.constant 0 : index
      %c0_63 = arith.constant 0 : index
      %65 = vector.load %arg7[%c0_61, %c0_62, %c0_63] : memref<4x8x8xf32, #tpu.memory_space<vmem>>, vector<4x8x8xf32>
      tpu.vector_store %arg7[%c0_61, %c0_62, %c0_63], %53 {strides = array<i32>} : memref<4x8x8xf32, #tpu.memory_space<vmem>>, vector<4x8x8xf32>,
    } else {
    }
    %c0_18 = arith.constant 0 : index
    %c0_19 = arith.constant 0 : index
    %c0_20 = arith.constant 0 : index
    %18 = vector.load %arg9[%c0_18, %c0_19, %c0_20] : memref<4x8x1xf32, #tpu.memory_space<vmem>>, vector<4x8x1xf32>
    %19 = tpu.reciprocal %18 : vector<4x8x1xf32> -> vector<4x8x1xf32>
    %c0_i32_21 = arith.constant 0 : i32
    %20 = arith.cmpi sge, %1, %c0_i32_21 : i32
    %21 = arith.extui %20 : i1 to i32
    %c0_i32_22 = arith.constant 0 : i32
    %22 = arith.cmpi ne, %21, %c0_i32_22 : i32
    scf.if %22 {
      %c0_37 = arith.constant 0 : index
      %c0_38 = arith.constant 0 : index
      %c0_39 = arith.constant 0 : index
      %49 = vector.load %arg7[%c0_37, %c0_38, %c0_39] : memref<4x8x8xf32, #tpu.memory_space<vmem>>, vector<4x8x8xf32>
      %50 = vector.broadcast %19 : vector<4x8x1xf32> to vector<4x8x8xf32>
      %51 = arith.mulf %49, %50 : vector<4x8x8xf32>
      %cst_40 = arith.constant dense<0.000000e+00> : vector<8x8xf32>
      %52 = vector.multi_reduction <add>, %51, %cst_40 [0] : vector<4x8x8xf32> to vector<8x8xf32>
      %cst_41 = arith.constant 4.000000e+00 : f32
      %53 = vector.broadcast %cst_41 : f32 to vector<8x8xf32>
      %54 = arith.divf %52, %53 : vector<8x8xf32>
      %c0_42 = arith.constant 0 : index
      %c0_43 = arith.constant 0 : index
      %c0_44 = arith.constant 0 : index
      %55 = vector.load %arg6[%c0_42, %c0_43, %c0_44] : memref<1x8x8xf32, #tpu.memory_space<vmem>>, vector<1x8x8xf32>
      %56 = vector.shape_cast %55 : vector<1x8x8xf32> to vector<8x8xf32>
      %57 = vector.shape_cast %54 : vector<8x8xf32> to vector<1x8x8xf32>
      tpu.vector_store %arg6[%c0_42, %c0_43, %c0_44], %57 {strides = array<i32>} : memref<1x8x8xf32, #tpu.memory_space<vmem>>, vector<1x8x8xf32>,
    } else {
    }
    %c0_i32_23 = arith.constant 0 : i32
    %23 = arith.cmpi slt, %1, %c0_i32_23 : i32
    %24 = arith.extui %23 : i1 to i32
    %c0_i32_24 = arith.constant 0 : i32
    %25 = arith.cmpi ne, %24, %c0_i32_24 : i32
    scf.if %25 {
      %cst_37 = arith.constant 0.000000e+00 : f32
      %49 = vector.broadcast %cst_37 : f32 to vector<8x8xf32>
      %c0_38 = arith.constant 0 : index
      %c0_39 = arith.constant 0 : index
      %c0_40 = arith.constant 0 : index
      %50 = vector.load %arg6[%c0_38, %c0_39, %c0_40] : memref<1x8x8xf32, #tpu.memory_space<vmem>>, vector<1x8x8xf32>
      %51 = vector.shape_cast %50 : vector<1x8x8xf32> to vector<8x8xf32>
      %52 = vector.shape_cast %49 : vector<8x8xf32> to vector<1x8x8xf32>
      tpu.vector_store %arg6[%c0_38, %c0_39, %c0_40], %52 {strides = array<i32>} : memref<1x8x8xf32, #tpu.memory_space<vmem>>, vector<1x8x8xf32>,
    } else {
    }
    %c0_25 = arith.constant 0 : index
    %c0_26 = arith.constant 0 : index
    %c0_27 = arith.constant 0 : index
    %26 = vector.load %arg10[%c0_25, %c0_26, %c0_27] : memref<4x8x8xf32, #tpu.memory_space<vmem>>, vector<4x8x8xf32>
    %27 = vector.broadcast %19 : vector<4x8x1xf32> to vector<4x8x8xf32>
    %28 = arith.mulf %26, %27 : vector<4x8x8xf32>
    %29 = vector.extract_strided_slice %28 {offsets = [0, 0, 0], sizes = [1, 8, 8], strides = [1, 1, 1]} : vector<4x8x8xf32> to vector<1x8x8xf32>
    %30 = vector.shape_cast %29 : vector<1x8x8xf32> to vector<8x8xf32>
    %c0_28 = arith.constant 0 : index
    %c0_29 = arith.constant 0 : index
    %c0_30 = arith.constant 0 : index
    %31 = vector.load %arg5[%c0_28, %c0_29, %c0_30] : memref<1x8x32xf32, #tpu.memory_space<vmem>>, vector<1x8x8xf32>
    %32 = vector.shape_cast %31 : vector<1x8x8xf32> to vector<8x8xf32>
    %33 = vector.shape_cast %30 : vector<8x8xf32> to vector<1x8x8xf32>
    tpu.vector_store %arg5[%c0_28, %c0_29, %c0_30], %33 {strides = array<i32>} : memref<1x8x32xf32, #tpu.memory_space<vmem>>, vector<1x8x8xf32>,
    %34 = vector.extract_strided_slice %28 {offsets = [1, 0, 0], sizes = [1, 8, 8], strides = [1, 1, 1]} : vector<4x8x8xf32> to vector<1x8x8xf32>
    %35 = vector.shape_cast %34 : vector<1x8x8xf32> to vector<8x8xf32>
    %c0_31 = arith.constant 0 : index
    %c0_32 = arith.constant 0 : index
    %c8 = arith.constant 8 : index
    %36 = vector.load %arg5[%c0_31, %c0_32, %c8] : memref<1x8x32xf32, #tpu.memory_space<vmem>>, vector<1x8x8xf32>
    %37 = vector.shape_cast %36 : vector<1x8x8xf32> to vector<8x8xf32>
    %38 = vector.shape_cast %35 : vector<8x8xf32> to vector<1x8x8xf32>
    tpu.vector_store %arg5[%c0_31, %c0_32, %c8], %38 {strides = array<i32>} : memref<1x8x32xf32, #tpu.memory_space<vmem>>, vector<1x8x8xf32>,
    %39 = vector.extract_strided_slice %28 {offsets = [2, 0, 0], sizes = [1, 8, 8], strides = [1, 1, 1]} : vector<4x8x8xf32> to vector<1x8x8xf32>
    %40 = vector.shape_cast %39 : vector<1x8x8xf32> to vector<8x8xf32>
    %c0_33 = arith.constant 0 : index
    %c0_34 = arith.constant 0 : index
    %c16 = arith.constant 16 : index
    %41 = vector.load %arg5[%c0_33, %c0_34, %c16] : memref<1x8x32xf32, #tpu.memory_space<vmem>>, vector<1x8x8xf32>
    %42 = vector.shape_cast %41 : vector<1x8x8xf32> to vector<8x8xf32>
    %43 = vector.shape_cast %40 : vector<8x8xf32> to vector<1x8x8xf32>
    tpu.vector_store %arg5[%c0_33, %c0_34, %c16], %43 {strides = array<i32>} : memref<1x8x32xf32, #tpu.memory_space<vmem>>, vector<1x8x8xf32>,
    %44 = vector.extract_strided_slice %28 {offsets = [3, 0, 0], sizes = [1, 8, 8], strides = [1, 1, 1]} : vector<4x8x8xf32> to vector<1x8x8xf32>
    %45 = vector.shape_cast %44 : vector<1x8x8xf32> to vector<8x8xf32>
    %c0_35 = arith.constant 0 : index
    %c0_36 = arith.constant 0 : index
    %c24 = arith.constant 24 : index
    %46 = vector.load %arg5[%c0_35, %c0_36, %c24] : memref<1x8x32xf32, #tpu.memory_space<vmem>>, vector<1x8x8xf32>
    %47 = vector.shape_cast %46 : vector<1x8x8xf32> to vector<8x8xf32>
    %48 = vector.shape_cast %45 : vector<8x8xf32> to vector<1x8x8xf32>
    tpu.vector_store %arg5[%c0_35, %c0_36, %c24], %48 {strides = array<i32>} : memref<1x8x32xf32, #tpu.memory_space<vmem>>, vector<1x8x8xf32>,
    return
  }
  func.func @transform_0(%arg0: i32, %arg1: i32) -> (i32, i32, i32, i32) {
    %c0_i32 = arith.constant 0 : i32
    %c0_i32_0 = arith.constant 0 : i32
    %c0_i32_1 = arith.constant 0 : i32
    return %arg0, %c0_i32, %arg1, %c0_i32_0 : i32, i32, i32, i32
  }
  func.func @transform_1(%arg0: i32, %arg1: i32) -> (i32, i32, i32, i32) {
    %c0_i32 = arith.constant 0 : i32
    %c0_i32_0 = arith.constant 0 : i32
    %c0_i32_1 = arith.constant 0 : i32
    %c0_i32_2 = arith.constant 0 : i32
    return %arg0, %c0_i32, %c0_i32_0, %c0_i32_1 : i32, i32, i32, i32
  }
  func.func @transform_2(%arg0: i32, %arg1: i32) -> (i32, i32, i32, i32) {
    %c0_i32 = arith.constant 0 : i32
    %c0_i32_0 = arith.constant 0 : i32
    %c0_i32_1 = arith.constant 0 : i32
    %c0_i32_2 = arith.constant 0 : i32
    return %arg0, %c0_i32, %c0_i32_0, %c0_i32_1 : i32, i32, i32, i32
  }
  func.func @transform_3(%arg0: i32, %arg1: i32) -> (i32, i32, i32) {
    %c0_i32 = arith.constant 0 : i32
    %c0_i32_0 = arith.constant 0 : i32
    return %arg0, %arg1, %c0_i32 : i32, i32, i32
  }
  func.func @transform_4(%arg0: i32, %arg1: i32) -> (i32, i32, i32) {
    %c0_i32 = arith.constant 0 : i32
    %c0_i32_0 = arith.constant 0 : i32
    return %arg0, %arg1, %c0_i32 : i32, i32, i32
  }
}

</mosaic_0001>

<llo_original>
// kernel: tpu_custom_call.1
$region0: #{tpu_custom_call.1}
  #allocation0 [shape = 'u32[]', space=smem, size = 0x4, offset = 0x4, fixed_abs, tag = 'smem constant byte address 0x4 - core index']
  #allocation1 [shape = 'u32[144,128]{1,0:T(1,128)}', space=vmem, size = 0x12000, scoped, tag = 'internal scratch']
  #allocation2 [shape = 'f32[4,8,8]{2,1,0:T(8,128)}', space=vmem, size = 0x4000, scoped, tag = 'scratch operand']
  #allocation3 [shape = 'f32[4,8,1]{2,1,0:T(8,128)}', space=vmem, size = 0x4000, scoped, tag = 'scratch operand']
  #allocation4 [shape = 'f32[4,8,1]{2,1,0:T(8,128)}', space=vmem, size = 0x4000, scoped, tag = 'scratch operand']
  #allocation5 [shape = 'f32[4,8,8]{2,1,0:T(8,128)}', space=vmem, size = 0x4000, scoped, tag = 'scratch operand']
  %s0 = inlined_call_operand.hbm [shape: f32[2,4,8,8], index: 0, kind: input, shape index: {}]
  %s1 = inlined_call_operand.hbm [shape: f32[2,4,8,8], index: 1, kind: input, shape index: {}]
  %s2 = inlined_call_operand.hbm [shape: f32[2,4,8,8], index: 2, kind: input, shape index: {}]
  %s3 = inlined_call_operand.hbm [shape: f32[2,8,32], index: 3, kind: output, shape index: {0}]
  %s4 = inlined_call_operand.hbm [shape: f32[2,8,8], index: 4, kind: output, shape index: {1}]
  %5 = xla_tuple %s3, %s4
  %s6 = sld [smem:[#allocation0]]
  $region77: #{tpu_custom_call.1} parent=0
    _
  %s8 = ssub.s32 1, %s6
  %s9 = scalar_select 0, %s8, %s6
  $region1: #{tpu_custom_call.1} parent=0
    #allocation6 [shape = 'u8[32768]{0}', space=vmem, size = 0x8000, scoped, tag = 'input window, operand 0']
    #allocation7 [shape = 's32[2]{0}', space=sflag, size = 0x8, scoped, tag = 'scoped memory for tpu_custom_call.1']
    #allocation8 [shape = 's32[2]{0}', space=sflag, size = 0x8, scoped, tag = 'scoped memory for tpu_custom_call.1']
    #allocation9 [shape = 'u8[32768]{0}', space=vmem, size = 0x8000, scoped, tag = 'input window, operand 1']
    #allocation10 [shape = 's32[2]{0}', space=sflag, size = 0x8, scoped, tag = 'scoped memory for tpu_custom_call.1']
    #allocation11 [shape = 'u8[32768]{0}', space=vmem, size = 0x8000, scoped, tag = 'input window, operand 2']
    #allocation12 [shape = 'u8[8192]{0}', space=vmem, size = 0x2000, scoped, tag = 'output window, operand 0']
    #allocation13 [shape = 'u8[8192]{0}', space=vmem, size = 0x2000, scoped, tag = 'output window, operand 1']
    #allocation14 [shape = 's32[2]{0}', space=sflag, size = 0x8, scoped, tag = 'scoped memory for tpu_custom_call.1']
    %10 = vsyncpa [#allocation7], 0
    %s11 = scalar_lea.sflag [#allocation7], 1
    %12 = vsyncpa %s11, 0
    %13 = vsyncpa [#allocation10], 0
    %s14 = scalar_lea.sflag [#allocation10], 1
    %15 = vsyncpa %s14, 0
    %16 = vsyncpa [#allocation8], 0
    %s17 = scalar_lea.sflag [#allocation8], 1
    %18 = vsyncpa %s17, 0
    %19 = vsyncpa [#allocation14], 0
    %s20 = scalar_lea.sflag [#allocation14], 1
    %21 = vsyncpa %s20, 0
    loop: start=0, step=1, limit=4
    $region2: #{tpu_custom_call.1} parent=1 // loop_pre_header
      _
    $region3: #{tpu_custom_call.1} parent=1 // loop_header
      %s23 = sphi 0, %s27
      %p24 = scmp.ge.s32.totalorder %s23, 4
      %s30 = sphi 0, %s42
      %s31 = sphi 0, %s38
      %s32 = sphi 0, %s30
      %s33 = sphi 0, %s31
      %s34 = sphi 0, %s32
      %s35 = sphi 0, %s33
      %s47 = sphi 0, %s49
      %s50 = sphi 0, %s47
      %s51 = sphi 0, %s50
      %s67 = sphi 0, %s51
      %s73 = sphi 0, %s75
      %s76 = sphi 0, %s73
      %s77 = sphi 0, %s76
      %s93 = sphi 0, %s77
      %s99 = sphi 0, %s101
      %s102 = sphi 0, %s99
      %s103 = sphi 0, %s102
      %s119 = sphi 0, %s103
      %s127 = sphi 0, %s129
      %s130 = sphi 0, %s127
      %s131 = sphi 0, %s130
      %s147 = sphi 0, %s131
      %s155 = sphi 0, %s157
      %s158 = sphi 0, %s155
      %s159 = sphi 0, %s158
      %s175 = sphi 0, %s159
    $region4: #{tpu_custom_call.1} parent=1 // loop_header_branch
      %26 = sbr.rel (%p24) target = $region8
    $region5: #{tpu_custom_call.1} parent=1 // loop_body
      %s28 = ssub.s32 %s23, 1
      %s29 = ssub.s32 %s23, 2
      %s36 = sadd.s32 1, %s31
      %p37 = scmp.ge.s32.totalorder %s36, 1
      %s38 = scalar_select %p37, 0, %s36
      %s39 = sadd.s32 1, %s30
      %s40 = scalar_select %p37, %s39, %s30
      %p41 = scmp.ge.s32.totalorder %s40, 2
      %s42 = scalar_select %p41, 0, %s40
      %s43 = ssub.s32 %s30, %s42
      %s44 = ssub.s32 %s31, %s38
      %s45 = sor.u32 %s43, %s44
      %p46 = scmp.eq.s32.totalorder %s45, 0
      %s48 = sadd.s32 %s47, 1
      %s49 = scalar_select %p46, %s47, %s48
      %p52 = pneg %p46
      %p53 = scmp.eq.s32.totalorder %s23, 1
      %p54 = por %p52, %p53
      %p55 = scmp.ne.s32.totalorder %s47, %s50
      %p56 = scmp.eq.s32.totalorder %s23, 0
      %p57 = por %p55, %p56
      %p58 = scmp.ne.s32.totalorder %s47, %s50
      %p59 = scmp.eq.s32.totalorder %s28, 1
      %p60 = por %p58, %p59
      %p61 = scmp.ne.s32.totalorder %s50, %s51
      %p62 = scmp.eq.s32.totalorder %s28, 0
      %p63 = por %p61, %p62
      %p64 = scmp.ne.s32.totalorder %s50, %s51
      %p65 = scmp.eq.s32.totalorder %s29, 1
      %p66 = por %p64, %p65
      %p68 = scmp.ne.s32.totalorder %s51, %s67
      %p69 = scmp.eq.s32.totalorder %s29, 0
      %p70 = por %p68, %p69
      %s71 = ssub.s32 %s30, %s42
      %p72 = scmp.eq.s32.totalorder %s71, 0
      %s74 = sadd.s32 %s73, 1
      %s75 = scalar_select %p72, %s73, %s74
      %p78 = pneg %p72
      %p79 = scmp.eq.s32.totalorder %s23, 1
      %p80 = por %p78, %p79
      %p81 = scmp.ne.s32.totalorder %s73, %s76
      %p82 = scmp.eq.s32.totalorder %s23, 0
      %p83 = por %p81, %p82
      %p84 = scmp.ne.s32.totalorder %s73, %s76
      %p85 = scmp.eq.s32.totalorder %s28, 1
      %p86 = por %p84, %p85
      %p87 = scmp.ne.s32.totalorder %s76, %s77
      %p88 = scmp.eq.s32.totalorder %s28, 0
      %p89 = por %p87, %p88
      %p90 = scmp.ne.s32.totalorder %s76, %s77
      %p91 = scmp.eq.s32.totalorder %s29, 1
      %p92 = por %p90, %p91
      %p94 = scmp.ne.s32.totalorder %s77, %s93
      %p95 = scmp.eq.s32.totalorder %s29, 0
      %p96 = por %p94, %p95
      %s97 = ssub.s32 %s30, %s42
      %p98 = scmp.eq.s32.totalorder %s97, 0
      %s100 = sadd.s32 %s99, 1
      %s101 = scalar_select %p98, %s99, %s100
      %p104 = pneg %p98
      %p105 = scmp.eq.s32.totalorder %s23, 1
      %p106 = por %p104, %p105
      %p107 = scmp.ne.s32.totalorder %s99, %s102
      %p108 = scmp.eq.s32.totalorder %s23, 0
      %p109 = por %p107, %p108
      %p110 = scmp.ne.s32.totalorder %s99, %s102
      %p111 = scmp.eq.s32.totalorder %s28, 1
      %p112 = por %p110, %p111
      %p113 = scmp.ne.s32.totalorder %s102, %s103
      %p114 = scmp.eq.s32.totalorder %s28, 0
      %p115 = por %p113, %p114
      %p116 = scmp.ne.s32.totalorder %s102, %s103
      %p117 = scmp.eq.s32.totalorder %s29, 1
      %p118 = por %p116, %p117
      %p120 = scmp.ne.s32.totalorder %s103, %s119
      %p121 = scmp.eq.s32.totalorder %s29, 0
      %p122 = por %p120, %p121
      %s123 = ssub.s32 %s30, %s42
      %s124 = ssub.s32 %s31, %s38
      %s125 = sor.u32 %s123, %s124
      %p126 = scmp.eq.s32.totalorder %s125, 0
      %s128 = sadd.s32 %s127, 1
      %s129 = scalar_select %p126, %s127, %s128
      %p132 = pneg %p126
      %p133 = scmp.eq.s32.totalorder %s23, 1
      %p134 = por %p132, %p133
      %p135 = scmp.ne.s32.totalorder %s127, %s130
      %p136 = scmp.eq.s32.totalorder %s23, 0
      %p137 = por %p135, %p136
      %p138 = scmp.ne.s32.totalorder %s127, %s130
      %p139 = scmp.eq.s32.totalorder %s28, 1
      %p140 = por %p138, %p139
      %p141 = scmp.ne.s32.totalorder %s130, %s131
      %p142 = scmp.eq.s32.totalorder %s28, 0
      %p143 = por %p141, %p142
      %p144 = scmp.ne.s32.totalorder %s130, %s131
      %p145 = scmp.eq.s32.totalorder %s29, 1
      %p146 = por %p144, %p145
      %p148 = scmp.ne.s32.totalorder %s131, %s147
      %p149 = scmp.eq.s32.totalorder %s29, 0
      %p150 = por %p148, %p149
      %s151 = ssub.s32 %s30, %s42
      %s152 = ssub.s32 %s31, %s38
      %s153 = sor.u32 %s151, %s152
      %p154 = scmp.eq.s32.totalorder %s153, 0
      %s156 = sadd.s32 %s155, 1
      %s157 = scalar_select %p154, %s155, %s156
      %p160 = pneg %p154
      %p161 = scmp.eq.s32.totalorder %s23, 1
      %p162 = por %p160, %p161
      %p163 = scmp.ne.s32.totalorder %s155, %s158
      %p164 = scmp.eq.s32.totalorder %s23, 0
      %p165 = por %p163, %p164
      %p166 = scmp.ne.s32.totalorder %s155, %s158
      %p167 = scmp.eq.s32.totalorder %s28, 1
      %p168 = por %p166, %p167
      %p169 = scmp.ne.s32.totalorder %s158, %s159
      %p170 = scmp.eq.s32.totalorder %s28, 0
      %p171 = por %p169, %p170
      %p172 = scmp.ne.s32.totalorder %s158, %s159
      %p173 = scmp.eq.s32.totalorder %s29, 1
      %p174 = por %p172, %p173
      %p176 = scmp.ne.s32.totalorder %s159, %s175
      %p177 = scmp.eq.s32.totalorder %s29, 0
      %p178 = por %p176, %p177
      %p179 = scmp.le.s32.totalorder 1, %s23
      %p180 = scmp.lt.s32.totalorder %s23, 3
      %p181 = pnand %p179, %p180
      %p182 = pneg %p181
      // Predicated region
      $region9: #{tpu_custom_call.1} parent=5 // pred_check
        _
      $region10: #{tpu_custom_call.1} parent=5 // pred_check_branch
        %184 = sbr.rel (%p181) target = $region12
      $region11: #{tpu_custom_call.1} parent=5 // pred_region
        %s185 = ssub.s32 %s23, 1
      $region12: #{tpu_custom_call.1} parent=5 // pred_fallthru
        _
      %p186 = scmp.lt.s32.totalorder %s23, 2
      // Predicated region
      $region13: #{tpu_custom_call.1} parent=5 // pred_check
        %p187 = pneg %p186
      $region14: #{tpu_custom_call.1} parent=5 // pred_check_branch
        %189 = sbr.rel (%p187) target = $region16
      $region15: #{tpu_custom_call.1} parent=5 // pred_region
        // Predicated region
        $region17: #{tpu_custom_call.1} parent=15 // pred_check
          %p190 = pneg %p57
        $region18: #{tpu_custom_call.1} parent=15 // pred_check_branch
          %192 = sbr.rel (%p190) target = $region20
        $region19: #{tpu_custom_call.1} parent=15 // pred_region
          %s193 = sand.u32 %s47, 1
          %s194 = scalar_lea.sflag [#allocation7], %s193
          %s195 = sand.u32 %s47, 1
          %s196 = smul.addr %s195, 32
          %s197 = scalar_lea.vmem [#allocation6], %s196
          %s199 = ssub.s32 512, 512
          %200 = vsyncadd %s194, %s199
          %s201 = smul.addr %s30, 4
          %s202 = sadd.s32 %s31, %s201
          %s203 = smul.addr %s202, 128
          %s204 = scalar_lea.hbm %s0, %s203
          %s205 = sshll.u32 %s197, 4
          %s206 = int_to_ptr.vmem [resolvable:$true] %s205
          %211 = dma.hbm_to_vmem [thread:$0]  %s204, 512, %s206, %s194, 128, 128, 8
        $region20: #{tpu_custom_call.1} parent=15 // pred_fallthru
          _
        // Predicated region
        $region21: #{tpu_custom_call.1} parent=15 // pred_check
          %p212 = pneg %p83
        $region22: #{tpu_custom_call.1} parent=15 // pred_check_branch
          %214 = sbr.rel (%p212) target = $region24
        $region23: #{tpu_custom_call.1} parent=15 // pred_region
          %s215 = sand.u32 %s23, 1
          %s216 = scalar_lea.sflag [#allocation10], %s215
          %s217 = sand.u32 %s73, 1
          %s218 = smul.addr %s217, 32
          %s219 = scalar_lea.vmem [#allocation9], %s218
          %s221 = ssub.s32 512, 512
          %222 = vsyncadd %s216, %s221
          %s223 = smul.addr %s30, 4
          %s224 = smul.addr %s223, 128
          %s225 = scalar_lea.hbm %s1, %s224
          %s226 = sshll.u32 %s219, 4
          %s227 = int_to_ptr.vmem [resolvable:$true] %s226
          %232 = dma.hbm_to_vmem [thread:$0]  %s225, 512, %s227, %s216, 128, 128, 8
        $region24: #{tpu_custom_call.1} parent=15 // pred_fallthru
          _
        // Predicated region
        $region25: #{tpu_custom_call.1} parent=15 // pred_check
          %p233 = pneg %p109
        $region26: #{tpu_custom_call.1} parent=15 // pred_check_branch
          %235 = sbr.rel (%p233) target = $region28
        $region27: #{tpu_custom_call.1} parent=15 // pred_region
          %s236 = sand.u32 %s23, 1
          %s237 = scalar_lea.sflag [#allocation10], %s236
          %s238 = sand.u32 %s99, 1
          %s239 = smul.addr %s238, 32
          %s240 = scalar_lea.vmem [#allocation11], %s239
          %s242 = ssub.s32 512, 512
          %243 = vsyncadd %s237, %s242
          %s244 = smul.addr %s30, 4
          %s245 = smul.addr %s244, 128
          %s246 = scalar_lea.hbm %s2, %s245
          %s247 = sshll.u32 %s240, 4
          %s248 = int_to_ptr.vmem [resolvable:$true] %s247
          %253 = dma.hbm_to_vmem [thread:$0]  %s246, 512, %s248, %s237, 128, 128, 8
        $region28: #{tpu_custom_call.1} parent=15 // pred_fallthru
          _
      $region16: #{tpu_custom_call.1} parent=5 // pred_fallthru
        _
      %p254 = scmp.le.s32.totalorder 1, %s23
      %p255 = scmp.lt.s32.totalorder %s23, 3
      %p256 = pnand %p254, %p255
      %p257 = pneg %p256
      // Predicated region
      $region29: #{tpu_custom_call.1} parent=5 // pred_check
        _
      $region30: #{tpu_custom_call.1} parent=5 // pred_check_branch
        %259 = sbr.rel (%p256) target = $region32
      $region31: #{tpu_custom_call.1} parent=5 // pred_region
        %s260 = ssub.s32 %s23, 1
        %s261 = sand.u32 %s50, 1
        %s262 = scalar_lea.sflag [#allocation7], %s261
        %s263 = sand.u32 %s50, 1
        %s264 = smul.addr %s263, 32
        %s265 = scalar_lea.vmem [#allocation6], %s264
        // Predicated region
        $region33: #{tpu_custom_call.1} parent=31 // pred_check
          %p266 = pneg %p63
        $region34: #{tpu_custom_call.1} parent=31 // pred_check_branch
          %268 = sbr.rel (%p266) target = $region36
        $region35: #{tpu_custom_call.1} parent=31 // pred_region
          %269 = dma.done %s262, 512
        $region36: #{tpu_custom_call.1} parent=31 // pred_fallthru
          _
        %s270 = sand.u32 %s28, 1
        %s271 = scalar_lea.sflag [#allocation10], %s270
        %s272 = sand.u32 %s76, 1
        %s273 = smul.addr %s272, 32
        %s274 = scalar_lea.vmem [#allocation9], %s273
        // Predicated region
        $region37: #{tpu_custom_call.1} parent=31 // pred_check
          %p275 = pneg %p89
        $region38: #{tpu_custom_call.1} parent=31 // pred_check_branch
          %277 = sbr.rel (%p275) target = $region40
        $region39: #{tpu_custom_call.1} parent=31 // pred_region
          %278 = dma.done %s271, 512
        $region40: #{tpu_custom_call.1} parent=31 // pred_fallthru
          _
        %s279 = sand.u32 %s28, 1
        %s280 = scalar_lea.sflag [#allocation10], %s279
        %s281 = sand.u32 %s102, 1
        %s282 = smul.addr %s281, 32
        %s283 = scalar_lea.vmem [#allocation11], %s282
        // Predicated region
        $region41: #{tpu_custom_call.1} parent=31 // pred_check
          %p284 = pneg %p115
        $region42: #{tpu_custom_call.1} parent=31 // pred_check_branch
          %286 = sbr.rel (%p284) target = $region44
        $region43: #{tpu_custom_call.1} parent=31 // pred_region
          %287 = dma.done %s280, 512
        $region44: #{tpu_custom_call.1} parent=31 // pred_fallthru
          _
        %s288 = sand.u32 %s50, 1
        %s289 = scalar_lea.sflag [#allocation7], %s288
        %s290 = sand.u32 %s50, 1
        %s291 = smul.addr %s290, 32
        %s292 = scalar_lea.vmem [#allocation6], %s291
        %p293 = pneg %p63
        %p294 = pneg %p60
        %s295 = sand.u32 %s28, 1
        %s296 = scalar_lea.sflag [#allocation10], %s295
        %s297 = sand.u32 %s76, 1
        %s298 = smul.addr %s297, 32
        %s299 = scalar_lea.vmem [#allocation9], %s298
        %p300 = pneg %p89
        %p301 = pneg %p86
        %s302 = sand.u32 %s28, 1
        %s303 = scalar_lea.sflag [#allocation10], %s302
        %s304 = sand.u32 %s102, 1
        %s305 = smul.addr %s304, 32
        %s306 = scalar_lea.vmem [#allocation11], %s305
        %p307 = pneg %p115
        %p308 = pneg %p112
        %p309 = pneg %p143
        %p310 = pneg %p140
        %s311 = sand.u32 %s130, 1
        %s312 = scalar_lea.sflag [#allocation8], %s311
        %s313 = sand.u32 %s130, 1
        %s314 = smul.addr %s313, 8
        %s315 = scalar_lea.vmem [#allocation12], %s314
        %p316 = pneg %p171
        %p317 = pneg %p168
        %s318 = sand.u32 %s158, 1
        %s319 = scalar_lea.sflag [#allocation14], %s318
        %s320 = sand.u32 %s158, 1
        %s321 = smul.addr %s320, 8
        %s322 = scalar_lea.vmem [#allocation13], %s321
        %s323 = smul.u32 %s33, 8
        %s324 = sadd.s32 %s323, 7
        %v325 = vld [vmem:[%s265] sm:$0xff]
        %v326 = vld [vmem:[%s265 + $0x8] sm:$0xff]
        %v327 = vld [vmem:[%s265 + $0x10] sm:$0xff]
        %v328 = vld [vmem:[%s265 + $0x18] sm:$0xff]
        %v329 = vmul.f32 %v325, 0.35355338
        %v330 = vmul.f32 %v326, 0.35355338
        %v331 = vmul.f32 %v327, 0.35355338
        %v332 = vmul.f32 %v328, 0.35355338
        %vm333 = vcmask 7168
        %334 = vst.msk [vmem:[#allocation3] sm:$0xff] %vm333, -inf
        %335 = vst.msk [vmem:[#allocation3 + $0x8] sm:$0xff] %vm333, -inf
        %336 = vst.msk [vmem:[#allocation3 + $0x10] sm:$0xff] %vm333, -inf
        %337 = vst.msk [vmem:[#allocation3 + $0x18] sm:$0xff] %vm333, -inf
        %338 = vst.msk [vmem:[#allocation4] sm:$0xff] %vm333, 0.0
        %339 = vst.msk [vmem:[#allocation4 + $0x8] sm:$0xff] %vm333, 0.0
        %340 = vst.msk [vmem:[#allocation4 + $0x10] sm:$0xff] %vm333, 0.0
        %341 = vst.msk [vmem:[#allocation4 + $0x18] sm:$0xff] %vm333, 0.0
        %vm342 = vcmask 64512
        %343 = vst.msk [vmem:[#allocation5] sm:$0xff] %vm342, 0.0
        %344 = vst.msk [vmem:[#allocation5 + $0x8] sm:$0xff] %vm342, 0.0
        %345 = vst.msk [vmem:[#allocation5 + $0x10] sm:$0xff] %vm342, 0.0
        %346 = vst.msk [vmem:[#allocation5 + $0x18] sm:$0xff] %vm342, 0.0
        %p347 = scmp.ge.s32.totalorder %s324, 0
        // Predicated region
        $region45: #{tpu_custom_call.1} parent=31 // pred_check
          %p348 = pneg %p347
        $region46: #{tpu_custom_call.1} parent=31 // pred_check_branch
          %350 = sbr.rel (%p348) target = $region48
        $region47: #{tpu_custom_call.1} parent=31 // pred_region
          %v351 = vld [vmem:[%s274] sm:$0xff]
          %v352 = vld [vmem:[%s274 + $0x8] sm:$0xff]
          %v353 = vld [vmem:[%s274 + $0x10] sm:$0xff]
          %v354 = vld [vmem:[%s274 + $0x18] sm:$0xff]
          %v356 = vsel %vm342, %v329, 0
          %v359 = vsel %vm342, %v351, 0
          %361 = vmatprep.subr.mxu0 0.0
          %362 = vmatpush1.xpose.msra.mxu0 %v359
          %363 = vmatprep.subr.mxu0 0.0
          %364 = vmatpush1.xpose.msra.mxu0 0.0
          %365 = vmatprep.subr.mxu0 0.0
          %366 = vmatpush1.xpose.msra.mxu0 0.0
          %367 = vmatprep.subr.mxu0 0.0
          %368 = vmatpush1.xpose.msra.mxu0 0.0
          %369 = vmatprep.subr.mxu0 0.0
          %370 = vmatpush1.xpose.msra.mxu0 0.0
          %371 = vmatprep.subr.mxu0 0.0
          %372 = vmatpush1.xpose.msra.mxu0 0.0
          %373 = vmatprep.subr.mxu0 0.0
          %374 = vmatpush1.xpose.msra.mxu0 0.0
          %375 = vmatprep.subr.mxu0 0.0
          %376 = vmatpush1.xpose.msra.mxu0 0.0
          %377 = vmatprep.subr.mxu0 0.0
          %378 = vmatpush1.xpose.msra.mxu0 0.0
          %379 = vmatprep.subr.mxu0 0.0
          %380 = vmatpush1.xpose.msra.mxu0 0.0
          %381 = vmatprep.subr.mxu0 0.0
          %382 = vmatpush1.xpose.msra.mxu0 0.0
          %383 = vmatprep.subr.mxu0 0.0
          %384 = vmatpush1.xpose.msra.mxu0 0.0
          %385 = vmatprep.subr.mxu0 0.0
          %386 = vmatpush1.xpose.msra.mxu0 0.0
          %387 = vmatprep.subr.mxu0 0.0
          %388 = vmatpush1.xpose.msra.mxu0 0.0
          %389 = vmatprep.subr.mxu0 0.0
          %390 = vmatpush1.xpose.msra.mxu0 0.0
          %391 = vmatprep.subr.mxu0 0.0
          %392 = vmatpush1.xpose.msra.mxu0 0.0
          %393 = vmatprep.subr.mxu0 0.0
          %394 = vmatpush1.xpose.msra.mxu0 0.0
          %395 = vmatprep.subr.mxu0 0.0
          %396 = vmatpush1.xpose.msra.mxu0 0.0
          %397 = vmatprep.subr.mxu0 0.0
          %398 = vmatpush1.xpose.msra.mxu0 0.0
          %399 = vmatprep.subr.mxu0 0.0
          %400 = vmatpush1.xpose.msra.mxu0 0.0
          %401 = vmatprep.subr.mxu0 0.0
          %402 = vmatpush1.xpose.msra.mxu0 0.0
          %403 = vmatprep.subr.mxu0 0.0
          %404 = vmatpush1.xpose.msra.mxu0 0.0
          %405 = vmatprep.subr.mxu0 0.0
          %406 = vmatpush1.xpose.msra.mxu0 0.0
          %407 = vmatprep.subr.mxu0 0.0
          %408 = vmatpush1.xpose.msra.mxu0 0.0
          %409 = vmatprep.subr.mxu0 0.0
          %410 = vmatpush1.xpose.msra.mxu0 0.0
          %411 = vmatprep.subr.mxu0 0.0
          %412 = vmatpush1.xpose.msra.mxu0 0.0
          %413 = vmatprep.subr.mxu0 0.0
          %414 = vmatpush1.xpose.msra.mxu0 0.0
          %415 = vmatprep.subr.mxu0 0.0
          %416 = vmatpush1.xpose.msra.mxu0 0.0
          %417 = vmatprep.subr.mxu0 0.0
          %418 = vmatpush1.xpose.msra.mxu0 0.0
          %419 = vmatprep.subr.mxu0 0.0
          %420 = vmatpush1.xpose.msra.mxu0 0.0
          %421 = vmatprep.subr.mxu0 0.0
          %422 = vmatpush1.xpose.msra.mxu0 0.0
          %423 = vmatprep.subr.mxu0 0.0
          %424 = vmatpush1.xpose.msra.mxu0 0.0
          %425 = vmatprep.mubr.f32.mxu0 0.0
          %426 = vmatmul.mubr.f32.gmra.mrb[0].mxu0 %v356
          %v427 = vpop.f32.mrb[0].mxu0
          %v428 = vadd.f32 0.0, %v427
          %v429 = vpop.f32.mrb[0].mxu0
          %430 = vdwg.mxu0
          %v432 = vsel %vm342, %v330, 0
          %v435 = vsel %vm342, %v352, 0
          %437 = vmatprep.subr.mxu0 0.0
          %438 = vmatpush1.xpose.msra.mxu0 %v435
          %439 = vmatprep.subr.mxu0 0.0
          %440 = vmatpush1.xpose.msra.mxu0 0.0
          %441 = vmatprep.subr.mxu0 0.0
          %442 = vmatpush1.xpose.msra.mxu0 0.0
          %443 = vmatprep.subr.mxu0 0.0
          %444 = vmatpush1.xpose.msra.mxu0 0.0
          %445 = vmatprep.subr.mxu0 0.0
          %446 = vmatpush1.xpose.msra.mxu0 0.0
          %447 = vmatprep.subr.mxu0 0.0
          %448 = vmatpush1.xpose.msra.mxu0 0.0
          %449 = vmatprep.subr.mxu0 0.0
          %450 = vmatpush1.xpose.msra.mxu0 0.0
          %451 = vmatprep.subr.mxu0 0.0
          %452 = vmatpush1.xpose.msra.mxu0 0.0
          %453 = vmatprep.subr.mxu0 0.0
          %454 = vmatpush1.xpose.msra.mxu0 0.0
          %455 = vmatprep.subr.mxu0 0.0
          %456 = vmatpush1.xpose.msra.mxu0 0.0
          %457 = vmatprep.subr.mxu0 0.0
          %458 = vmatpush1.xpose.msra.mxu0 0.0
          %459 = vmatprep.subr.mxu0 0.0
          %460 = vmatpush1.xpose.msra.mxu0 0.0
          %461 = vmatprep.subr.mxu0 0.0
          %462 = vmatpush1.xpose.msra.mxu0 0.0
          %463 = vmatprep.subr.mxu0 0.0
          %464 = vmatpush1.xpose.msra.mxu0 0.0
          %465 = vmatprep.subr.mxu0 0.0
          %466 = vmatpush1.xpose.msra.mxu0 0.0
          %467 = vmatprep.subr.mxu0 0.0
          %468 = vmatpush1.xpose.msra.mxu0 0.0
          %469 = vmatprep.subr.mxu0 0.0
          %470 = vmatpush1.xpose.msra.mxu0 0.0
          %471 = vmatprep.subr.mxu0 0.0
          %472 = vmatpush1.xpose.msra.mxu0 0.0
          %473 = vmatprep.subr.mxu0 0.0
          %474 = vmatpush1.xpose.msra.mxu0 0.0
          %475 = vmatprep.subr.mxu0 0.0
          %476 = vmatpush1.xpose.msra.mxu0 0.0
          %477 = vmatprep.subr.mxu0 0.0
          %478 = vmatpush1.xpose.msra.mxu0 0.0
          %479 = vmatprep.subr.mxu0 0.0
          %480 = vmatpush1.xpose.msra.mxu0 0.0
          %481 = vmatprep.subr.mxu0 0.0
          %482 = vmatpush1.xpose.msra.mxu0 0.0
          %483 = vmatprep.subr.mxu0 0.0
          %484 = vmatpush1.xpose.msra.mxu0 0.0
          %485 = vmatprep.subr.mxu0 0.0
          %486 = vmatpush1.xpose.msra.mxu0 0.0
          %487 = vmatprep.subr.mxu0 0.0
          %488 = vmatpush1.xpose.msra.mxu0 0.0
          %489 = vmatprep.subr.mxu0 0.0
          %490 = vmatpush1.xpose.msra.mxu0 0.0
          %491 = vmatprep.subr.mxu0 0.0
          %492 = vmatpush1.xpose.msra.mxu0 0.0
          %493 = vmatprep.subr.mxu0 0.0
          %494 = vmatpush1.xpose.msra.mxu0 0.0
          %495 = vmatprep.subr.mxu0 0.0
          %496 = vmatpush1.xpose.msra.mxu0 0.0
          %497 = vmatprep.subr.mxu0 0.0
          %498 = vmatpush1.xpose.msra.mxu0 0.0
          %499 = vmatprep.subr.mxu0 0.0
          %500 = vmatpush1.xpose.msra.mxu0 0.0
          %501 = vmatprep.mubr.f32.mxu0 0.0
          %502 = vmatmul.mubr.f32.gmra.mrb[0].mxu0 %v432
          %v503 = vpop.f32.mrb[0].mxu0
          %v504 = vadd.f32 0.0, %v503
          %v505 = vpop.f32.mrb[0].mxu0
          %506 = vdwg.mxu0
          %v508 = vsel %vm342, %v331, 0
          %v511 = vsel %vm342, %v353, 0
          %513 = vmatprep.subr.mxu0 0.0
          %514 = vmatpush1.xpose.msra.mxu0 %v511
          %515 = vmatprep.subr.mxu0 0.0
          %516 = vmatpush1.xpose.msra.mxu0 0.0
          %517 = vmatprep.subr.mxu0 0.0
          %518 = vmatpush1.xpose.msra.mxu0 0.0
          %519 = vmatprep.subr.mxu0 0.0
          %520 = vmatpush1.xpose.msra.mxu0 0.0
          %521 = vmatprep.subr.mxu0 0.0
          %522 = vmatpush1.xpose.msra.mxu0 0.0
          %523 = vmatprep.subr.mxu0 0.0
          %524 = vmatpush1.xpose.msra.mxu0 0.0
          %525 = vmatprep.subr.mxu0 0.0
          %526 = vmatpush1.xpose.msra.mxu0 0.0
          %527 = vmatprep.subr.mxu0 0.0
          %528 = vmatpush1.xpose.msra.mxu0 0.0
          %529 = vmatprep.subr.mxu0 0.0
          %530 = vmatpush1.xpose.msra.mxu0 0.0
          %531 = vmatprep.subr.mxu0 0.0
          %532 = vmatpush1.xpose.msra.mxu0 0.0
          %533 = vmatprep.subr.mxu0 0.0
          %534 = vmatpush1.xpose.msra.mxu0 0.0
          %535 = vmatprep.subr.mxu0 0.0
          %536 = vmatpush1.xpose.msra.mxu0 0.0
          %537 = vmatprep.subr.mxu0 0.0
          %538 = vmatpush1.xpose.msra.mxu0 0.0
          %539 = vmatprep.subr.mxu0 0.0
          %540 = vmatpush1.xpose.msra.mxu0 0.0
          %541 = vmatprep.subr.mxu0 0.0
          %542 = vmatpush1.xpose.msra.mxu0 0.0
          %543 = vmatprep.subr.mxu0 0.0
          %544 = vmatpush1.xpose.msra.mxu0 0.0
          %545 = vmatprep.subr.mxu0 0.0
          %546 = vmatpush1.xpose.msra.mxu0 0.0
          %547 = vmatprep.subr.mxu0 0.0
          %548 = vmatpush1.xpose.msra.mxu0 0.0
          %549 = vmatprep.subr.mxu0 0.0
          %550 = vmatpush1.xpose.msra.mxu0 0.0
          %551 = vmatprep.subr.mxu0 0.0
          %552 = vmatpush1.xpose.msra.mxu0 0.0
          %553 = vmatprep.subr.mxu0 0.0
          %554 = vmatpush1.xpose.msra.mxu0 0.0
          %555 = vmatprep.subr.mxu0 0.0
          %556 = vmatpush1.xpose.msra.mxu0 0.0
          %557 = vmatprep.subr.mxu0 0.0
          %558 = vmatpush1.xpose.msra.mxu0 0.0
          %559 = vmatprep.subr.mxu0 0.0
          %560 = vmatpush1.xpose.msra.mxu0 0.0
          %561 = vmatprep.subr.mxu0 0.0
          %562 = vmatpush1.xpose.msra.mxu0 0.0
          %563 = vmatprep.subr.mxu0 0.0
          %564 = vmatpush1.xpose.msra.mxu0 0.0
          %565 = vmatprep.subr.mxu0 0.0
          %566 = vmatpush1.xpose.msra.mxu0 0.0
          %567 = vmatprep.subr.mxu0 0.0
          %568 = vmatpush1.xpose.msra.mxu0 0.0
          %569 = vmatprep.subr.mxu0 0.0
          %570 = vmatpush1.xpose.msra.mxu0 0.0
          %571 = vmatprep.subr.mxu0 0.0
          %572 = vmatpush1.xpose.msra.mxu0 0.0
          %573 = vmatprep.subr.mxu0 0.0
          %574 = vmatpush1.xpose.msra.mxu0 0.0
          %575 = vmatprep.subr.mxu0 0.0
          %576 = vmatpush1.xpose.msra.mxu0 0.0
          %577 = vmatprep.mubr.f32.mxu0 0.0
          %578 = vmatmul.mubr.f32.gmra.mrb[0].mxu0 %v508
          %v579 = vpop.f32.mrb[0].mxu0
          %v580 = vadd.f32 0.0, %v579
          %v581 = vpop.f32.mrb[0].mxu0
          %582 = vdwg.mxu0
          %v584 = vsel %vm342, %v332, 0
          %v587 = vsel %vm342, %v354, 0
          %589 = vmatprep.subr.mxu0 0.0
          %590 = vmatpush1.xpose.msra.mxu0 %v587
          %591 = vmatprep.subr.mxu0 0.0
          %592 = vmatpush1.xpose.msra.mxu0 0.0
          %593 = vmatprep.subr.mxu0 0.0
          %594 = vmatpush1.xpose.msra.mxu0 0.0
          %595 = vmatprep.subr.mxu0 0.0
          %596 = vmatpush1.xpose.msra.mxu0 0.0
          %597 = vmatprep.subr.mxu0 0.0
          %598 = vmatpush1.xpose.msra.mxu0 0.0
          %599 = vmatprep.subr.mxu0 0.0
          %600 = vmatpush1.xpose.msra.mxu0 0.0
          %601 = vmatprep.subr.mxu0 0.0
          %602 = vmatpush1.xpose.msra.mxu0 0.0
          %603 = vmatprep.subr.mxu0 0.0
          %604 = vmatpush1.xpose.msra.mxu0 0.0
          %605 = vmatprep.subr.mxu0 0.0
          %606 = vmatpush1.xpose.msra.mxu0 0.0
          %607 = vmatprep.subr.mxu0 0.0
          %608 = vmatpush1.xpose.msra.mxu0 0.0
          %609 = vmatprep.subr.mxu0 0.0
          %610 = vmatpush1.xpose.msra.mxu0 0.0
          %611 = vmatprep.subr.mxu0 0.0
          %612 = vmatpush1.xpose.msra.mxu0 0.0
          %613 = vmatprep.subr.mxu0 0.0
          %614 = vmatpush1.xpose.msra.mxu0 0.0
          %615 = vmatprep.subr.mxu0 0.0
          %616 = vmatpush1.xpose.msra.mxu0 0.0
          %617 = vmatprep.subr.mxu0 0.0
          %618 = vmatpush1.xpose.msra.mxu0 0.0
          %619 = vmatprep.subr.mxu0 0.0
          %620 = vmatpush1.xpose.msra.mxu0 0.0
          %621 = vmatprep.subr.mxu0 0.0
          %622 = vmatpush1.xpose.msra.mxu0 0.0
          %623 = vmatprep.subr.mxu0 0.0
          %624 = vmatpush1.xpose.msra.mxu0 0.0
          %625 = vmatprep.subr.mxu0 0.0
          %626 = vmatpush1.xpose.msra.mxu0 0.0
          %627 = vmatprep.subr.mxu0 0.0
          %628 = vmatpush1.xpose.msra.mxu0 0.0
          %629 = vmatprep.subr.mxu0 0.0
          %630 = vmatpush1.xpose.msra.mxu0 0.0
          %631 = vmatprep.subr.mxu0 0.0
          %632 = vmatpush1.xpose.msra.mxu0 0.0
          %633 = vmatprep.subr.mxu0 0.0
          %634 = vmatpush1.xpose.msra.mxu0 0.0
          %635 = vmatprep.subr.mxu0 0.0
          %636 = vmatpush1.xpose.msra.mxu0 0.0
          %637 = vmatprep.subr.mxu0 0.0
          %638 = vmatpush1.xpose.msra.mxu0 0.0
          %639 = vmatprep.subr.mxu0 0.0
          %640 = vmatpush1.xpose.msra.mxu0 0.0
          %641 = vmatprep.subr.mxu0 0.0
          %642 = vmatpush1.xpose.msra.mxu0 0.0
          %643 = vmatprep.subr.mxu0 0.0
          %644 = vmatpush1.xpose.msra.mxu0 0.0
          %645 = vmatprep.subr.mxu0 0.0
          %646 = vmatpush1.xpose.msra.mxu0 0.0
          %647 = vmatprep.subr.mxu0 0.0
          %648 = vmatpush1.xpose.msra.mxu0 0.0
          %649 = vmatprep.subr.mxu0 0.0
          %650 = vmatpush1.xpose.msra.mxu0 0.0
          %651 = vmatprep.subr.mxu0 0.0
          %652 = vmatpush1.xpose.msra.mxu0 0.0
          %653 = vmatprep.mubr.f32.mxu0 0.0
          %654 = vmatmul.mubr.f32.gmra.mrb[0].mxu0 %v584
          %v655 = vpop.f32.mrb[0].mxu0
          %v656 = vadd.f32 0.0, %v655
          %v657 = vpop.f32.mrb[0].mxu0
          %658 = vdwg.mxu0
          %v659 = vlaneseq
          %v660 = vshrl.u32 %v659, 7
          %v661 = vstv %s323
          %v662 = vadd.s32 %v660, %v661
          %v663 = vlaneseq
          %v664 = vand.u32 %v663, 127
          %vm665 = vcmp.le.s32.totalorder %v664, %v662
          %v666 = vsel %vm665, 1, 0
          %vm667 = vcmp.eq.s32.totalorder %v666, 1
          %v668 = vsel %vm667, %v428, -inf
          %v669 = vsel %vm667, %v504, -inf
          %v670 = vsel %vm667, %v580, -inf
          %v671 = vsel %vm667, %v656, -inf
          %672 = vst.msk [vmem:[#allocation2] sm:$0xff] %vm342, %v668
          %673 = vst.msk [vmem:[#allocation2 + $0x8] sm:$0xff] %vm342, %v669
          %674 = vst.msk [vmem:[#allocation2 + $0x10] sm:$0xff] %vm342, %v670
          %675 = vst.msk [vmem:[#allocation2 + $0x18] sm:$0xff] %vm342, %v671
          %v676 = vld [vmem:[#allocation3] sm:$0xff]
          %v677 = vld [vmem:[#allocation3 + $0x8] sm:$0xff]
          %v678 = vld [vmem:[#allocation3 + $0x10] sm:$0xff]
          %v679 = vld [vmem:[#allocation3 + $0x18] sm:$0xff]
          %v680 = vsel %vm342, %v668, -inf
          %681 = vmax.xlane.f32.xlu0 %v680
          %v682 = vpop.xlane.xlu0 %681
          %v683 = vsel %vm342, %v669, -inf
          %684 = vmax.xlane.f32.xlu0 %v683
          %v685 = vpop.xlane.xlu0 %684
          %v686 = vsel %vm342, %v670, -inf
          %687 = vmax.xlane.f32.xlu0 %v686
          %v688 = vpop.xlane.xlu0 %687
          %v689 = vsel %vm342, %v671, -inf
          %690 = vmax.xlane.f32.xlu0 %v689
          %v691 = vpop.xlane.xlu0 %690
          %v692 = vmax.f32 %v676, %v682
          %v693 = vmax.f32 %v677, %v685
          %v694 = vmax.f32 %v678, %v688
          %v695 = vmax.f32 %v679, %v691
          %696 = vst.msk [vmem:[#allocation3] sm:$0xff] %vm333, %v692
          %697 = vst.msk [vmem:[#allocation3 + $0x8] sm:$0xff] %vm333, %v693
          %698 = vst.msk [vmem:[#allocation3 + $0x10] sm:$0xff] %vm333, %v694
          %699 = vst.msk [vmem:[#allocation3 + $0x18] sm:$0xff] %vm333, %v695
          %v700 = vld [vmem:[#allocation2] sm:$0xff]
          %v701 = vld [vmem:[#allocation2 + $0x8] sm:$0xff]
          %v702 = vld [vmem:[#allocation2 + $0x10] sm:$0xff]
          %v703 = vld [vmem:[#allocation2 + $0x18] sm:$0xff]
          %v704 = vld [vmem:[#allocation3] sm:$0xff]
          %v705 = vld [vmem:[#allocation3 + $0x8] sm:$0xff]
          %v706 = vld [vmem:[#allocation3 + $0x10] sm:$0xff]
          %v707 = vld [vmem:[#allocation3 + $0x18] sm:$0xff]
          %709 = vset.pattern.permute.xlu0 0
          %710 = vperm.xlu0 %709, %v704
          %v711 = vpop.permute.xlu0 %710
          %714 = vset.pattern.permute.xlu0 0
          %715 = vperm.xlu0 %714, %v705
          %v716 = vpop.permute.xlu0 %715
          %719 = vset.pattern.permute.xlu0 0
          %720 = vperm.xlu0 %719, %v706
          %v721 = vpop.permute.xlu0 %720
          %724 = vset.pattern.permute.xlu0 0
          %725 = vperm.xlu0 %724, %v707
          %v726 = vpop.permute.xlu0 %725
          %v728 = vsub.f32 %v700, %v711
          %v729 = vsub.f32 %v701, %v716
          %v730 = vsub.f32 %v702, %v721
          %v731 = vsub.f32 %v703, %v726
          %v732 = vmul.f32 %v728, 1.442695
          %v733 = vpow.pop %v732
          %v734 = vmul.f32 %v729, 1.442695
          %v735 = vpow.pop %v734
          %v736 = vmul.f32 %v730, 1.442695
          %v737 = vpow.pop %v736
          %v738 = vmul.f32 %v731, 1.442695
          %v739 = vpow.pop %v738
          %v740 = vld [vmem:[#allocation4] sm:$0xff]
          %v741 = vld [vmem:[#allocation4 + $0x8] sm:$0xff]
          %v742 = vld [vmem:[#allocation4 + $0x10] sm:$0xff]
          %v743 = vld [vmem:[#allocation4 + $0x18] sm:$0xff]
          %v744 = vsel %vm342, %v733, 0.0
          %745 = vadd.xlane.f32.xlu0 %v744
          %v746 = vpop.xlane.xlu0 %745
          %v747 = vsel %vm342, %v735, 0.0
          %748 = vadd.xlane.f32.xlu0 %v747
          %v749 = vpop.xlane.xlu0 %748
          %v750 = vsel %vm342, %v737, 0.0
          %751 = vadd.xlane.f32.xlu0 %v750
          %v752 = vpop.xlane.xlu0 %751
          %v753 = vsel %vm342, %v739, 0.0
          %754 = vadd.xlane.f32.xlu0 %v753
          %v755 = vpop.xlane.xlu0 %754
          %v756 = vadd.f32 %v740, %v746
          %v757 = vadd.f32 %v741, %v749
          %v758 = vadd.f32 %v742, %v752
          %v759 = vadd.f32 %v743, %v755
          %760 = vst.msk [vmem:[#allocation4] sm:$0xff] %vm333, %v756
          %761 = vst.msk [vmem:[#allocation4 + $0x8] sm:$0xff] %vm333, %v757
          %762 = vst.msk [vmem:[#allocation4 + $0x10] sm:$0xff] %vm333, %v758
          %763 = vst.msk [vmem:[#allocation4 + $0x18] sm:$0xff] %vm333, %v759
          %v764 = vld [vmem:[%s283] sm:$0xff]
          %v765 = vld [vmem:[%s283 + $0x8] sm:$0xff]
          %v766 = vld [vmem:[%s283 + $0x10] sm:$0xff]
          %v767 = vld [vmem:[%s283 + $0x18] sm:$0xff]
          %v768 = vld [vmem:[#allocation5] sm:$0xff]
          %v769 = vld [vmem:[#allocation5 + $0x8] sm:$0xff]
          %v770 = vld [vmem:[#allocation5 + $0x10] sm:$0xff]
          %v771 = vld [vmem:[#allocation5 + $0x18] sm:$0xff]
          %v773 = vsel %vm342, %v733, 0
          %775 = vmatprep.subr.mxu0 0.0
          %776 = vmatpush1.msra.mxu0 %v764
          %777 = vmatprep.subr.mxu0 0.0
          %778 = vmatpush1.msra.mxu0 0.0
          %779 = vmatprep.subr.mxu0 0.0
          %780 = vmatpush1.msra.mxu0 0.0
          %781 = vmatprep.subr.mxu0 0.0
          %782 = vmatpush1.msra.mxu0 0.0
          %783 = vmatprep.subr.mxu0 0.0
          %784 = vmatpush1.msra.mxu0 0.0
          %785 = vmatprep.subr.mxu0 0.0
          %786 = vmatpush1.msra.mxu0 0.0
          %787 = vmatprep.subr.mxu0 0.0
          %788 = vmatpush1.msra.mxu0 0.0
          %789 = vmatprep.subr.mxu0 0.0
          %790 = vmatpush1.msra.mxu0 0.0
          %791 = vmatprep.subr.mxu0 0.0
          %792 = vmatpush1.msra.mxu0 0.0
          %793 = vmatprep.subr.mxu0 0.0
          %794 = vmatpush1.msra.mxu0 0.0
          %795 = vmatprep.subr.mxu0 0.0
          %796 = vmatpush1.msra.mxu0 0.0
          %797 = vmatprep.subr.mxu0 0.0
          %798 = vmatpush1.msra.mxu0 0.0
          %799 = vmatprep.subr.mxu0 0.0
          %800 = vmatpush1.msra.mxu0 0.0
          %801 = vmatprep.subr.mxu0 0.0
          %802 = vmatpush1.msra.mxu0 0.0
          %803 = vmatprep.subr.mxu0 0.0
          %804 = vmatpush1.msra.mxu0 0.0
          %805 = vmatprep.subr.mxu0 0.0
          %806 = vmatpush1.msra.mxu0 0.0
          %807 = vmatprep.subr.mxu0 0.0
          %808 = vmatpush1.msra.mxu0 0.0
          %809 = vmatprep.subr.mxu0 0.0
          %810 = vmatpush1.msra.mxu0 0.0
          %811 = vmatprep.subr.mxu0 0.0
          %812 = vmatpush1.msra.mxu0 0.0
          %813 = vmatprep.subr.mxu0 0.0
          %814 = vmatpush1.msra.mxu0 0.0
          %815 = vmatprep.subr.mxu0 0.0
          %816 = vmatpush1.msra.mxu0 0.0
          %817 = vmatprep.subr.mxu0 0.0
          %818 = vmatpush1.msra.mxu0 0.0
          %819 = vmatprep.subr.mxu0 0.0
          %820 = vmatpush1.msra.mxu0 0.0
          %821 = vmatprep.subr.mxu0 0.0
          %822 = vmatpush1.msra.mxu0 0.0
          %823 = vmatprep.subr.mxu0 0.0
          %824 = vmatpush1.msra.mxu0 0.0
          %825 = vmatprep.subr.mxu0 0.0
          %826 = vmatpush1.msra.mxu0 0.0
          %827 = vmatprep.subr.mxu0 0.0
          %828 = vmatpush1.msra.mxu0 0.0
          %829 = vmatprep.subr.mxu0 0.0
          %830 = vmatpush1.msra.mxu0 0.0
          %831 = vmatprep.subr.mxu0 0.0
          %832 = vmatpush1.msra.mxu0 0.0
          %833 = vmatprep.subr.mxu0 0.0
          %834 = vmatpush1.msra.mxu0 0.0
          %835 = vmatprep.subr.mxu0 0.0
          %836 = vmatpush1.msra.mxu0 0.0
          %837 = vmatprep.subr.mxu0 0.0
          %838 = vmatpush1.msra.mxu0 0.0
          %839 = vmatprep.mubr.f32.mxu0 0.0
          %840 = vmatmul.mubr.f32.gmra.mrb[0].mxu0 %v773
          %v841 = vpop.f32.mrb[0].mxu0
          %v842 = vadd.f32 0.0, %v841
          %v843 = vpop.f32.mrb[0].mxu0
          %844 = vdwg.mxu0
          %v846 = vsel %vm342, %v735, 0
          %848 = vmatprep.subr.mxu0 0.0
          %849 = vmatpush1.msra.mxu0 %v765
          %850 = vmatprep.subr.mxu0 0.0
          %851 = vmatpush1.msra.mxu0 0.0
          %852 = vmatprep.subr.mxu0 0.0
          %853 = vmatpush1.msra.mxu0 0.0
          %854 = vmatprep.subr.mxu0 0.0
          %855 = vmatpush1.msra.mxu0 0.0
          %856 = vmatprep.subr.mxu0 0.0
          %857 = vmatpush1.msra.mxu0 0.0
          %858 = vmatprep.subr.mxu0 0.0
          %859 = vmatpush1.msra.mxu0 0.0
          %860 = vmatprep.subr.mxu0 0.0
          %861 = vmatpush1.msra.mxu0 0.0
          %862 = vmatprep.subr.mxu0 0.0
          %863 = vmatpush1.msra.mxu0 0.0
          %864 = vmatprep.subr.mxu0 0.0
          %865 = vmatpush1.msra.mxu0 0.0
          %866 = vmatprep.subr.mxu0 0.0
          %867 = vmatpush1.msra.mxu0 0.0
          %868 = vmatprep.subr.mxu0 0.0
          %869 = vmatpush1.msra.mxu0 0.0
          %870 = vmatprep.subr.mxu0 0.0
          %871 = vmatpush1.msra.mxu0 0.0
          %872 = vmatprep.subr.mxu0 0.0
          %873 = vmatpush1.msra.mxu0 0.0
          %874 = vmatprep.subr.mxu0 0.0
          %875 = vmatpush1.msra.mxu0 0.0
          %876 = vmatprep.subr.mxu0 0.0
          %877 = vmatpush1.msra.mxu0 0.0
          %878 = vmatprep.subr.mxu0 0.0
          %879 = vmatpush1.msra.mxu0 0.0
          %880 = vmatprep.subr.mxu0 0.0
          %881 = vmatpush1.msra.mxu0 0.0
          %882 = vmatprep.subr.mxu0 0.0
          %883 = vmatpush1.msra.mxu0 0.0
          %884 = vmatprep.subr.mxu0 0.0
          %885 = vmatpush1.msra.mxu0 0.0
          %886 = vmatprep.subr.mxu0 0.0
          %887 = vmatpush1.msra.mxu0 0.0
          %888 = vmatprep.subr.mxu0 0.0
          %889 = vmatpush1.msra.mxu0 0.0
          %890 = vmatprep.subr.mxu0 0.0
          %891 = vmatpush1.msra.mxu0 0.0
          %892 = vmatprep.subr.mxu0 0.0
          %893 = vmatpush1.msra.mxu0 0.0
          %894 = vmatprep.subr.mxu0 0.0
          %895 = vmatpush1.msra.mxu0 0.0
          %896 = vmatprep.subr.mxu0 0.0
          %897 = vmatpush1.msra.mxu0 0.0
          %898 = vmatprep.subr.mxu0 0.0
          %899 = vmatpush1.msra.mxu0 0.0
          %900 = vmatprep.subr.mxu0 0.0
          %901 = vmatpush1.msra.mxu0 0.0
          %902 = vmatprep.subr.mxu0 0.0
          %903 = vmatpush1.msra.mxu0 0.0
          %904 = vmatprep.subr.mxu0 0.0
          %905 = vmatpush1.msra.mxu0 0.0
          %906 = vmatprep.subr.mxu0 0.0
          %907 = vmatpush1.msra.mxu0 0.0
          %908 = vmatprep.subr.mxu0 0.0
          %909 = vmatpush1.msra.mxu0 0.0
          %910 = vmatprep.subr.mxu0 0.0
          %911 = vmatpush1.msra.mxu0 0.0
          %912 = vmatprep.mubr.f32.mxu0 0.0
          %913 = vmatmul.mubr.f32.gmra.mrb[0].mxu0 %v846
          %v914 = vpop.f32.mrb[0].mxu0
          %v915 = vadd.f32 0.0, %v914
          %v916 = vpop.f32.mrb[0].mxu0
          %917 = vdwg.mxu0
          %v919 = vsel %vm342, %v737, 0
          %921 = vmatprep.subr.mxu0 0.0
          %922 = vmatpush1.msra.mxu0 %v766
          %923 = vmatprep.subr.mxu0 0.0
          %924 = vmatpush1.msra.mxu0 0.0
          %925 = vmatprep.subr.mxu0 0.0
          %926 = vmatpush1.msra.mxu0 0.0
          %927 = vmatprep.subr.mxu0 0.0
          %928 = vmatpush1.msra.mxu0 0.0
          %929 = vmatprep.subr.mxu0 0.0
          %930 = vmatpush1.msra.mxu0 0.0
          %931 = vmatprep.subr.mxu0 0.0
          %932 = vmatpush1.msra.mxu0 0.0
          %933 = vmatprep.subr.mxu0 0.0
          %934 = vmatpush1.msra.mxu0 0.0
          %935 = vmatprep.subr.mxu0 0.0
          %936 = vmatpush1.msra.mxu0 0.0
          %937 = vmatprep.subr.mxu0 0.0
          %938 = vmatpush1.msra.mxu0 0.0
          %939 = vmatprep.subr.mxu0 0.0
          %940 = vmatpush1.msra.mxu0 0.0
          %941 = vmatprep.subr.mxu0 0.0
          %942 = vmatpush1.msra.mxu0 0.0
          %943 = vmatprep.subr.mxu0 0.0
          %944 = vmatpush1.msra.mxu0 0.0
          %945 = vmatprep.subr.mxu0 0.0
          %946 = vmatpush1.msra.mxu0 0.0
          %947 = vmatprep.subr.mxu0 0.0
          %948 = vmatpush1.msra.mxu0 0.0
          %949 = vmatprep.subr.mxu0 0.0
          %950 = vmatpush1.msra.mxu0 0.0
          %951 = vmatprep.subr.mxu0 0.0
          %952 = vmatpush1.msra.mxu0 0.0
          %953 = vmatprep.subr.mxu0 0.0
          %954 = vmatpush1.msra.mxu0 0.0
          %955 = vmatprep.subr.mxu0 0.0
          %956 = vmatpush1.msra.mxu0 0.0
          %957 = vmatprep.subr.mxu0 0.0
          %958 = vmatpush1.msra.mxu0 0.0
          %959 = vmatprep.subr.mxu0 0.0
          %960 = vmatpush1.msra.mxu0 0.0
          %961 = vmatprep.subr.mxu0 0.0
          %962 = vmatpush1.msra.mxu0 0.0
          %963 = vmatprep.subr.mxu0 0.0
          %964 = vmatpush1.msra.mxu0 0.0
          %965 = vmatprep.subr.mxu0 0.0
          %966 = vmatpush1.msra.mxu0 0.0
          %967 = vmatprep.subr.mxu0 0.0
          %968 = vmatpush1.msra.mxu0 0.0
          %969 = vmatprep.subr.mxu0 0.0
          %970 = vmatpush1.msra.mxu0 0.0
          %971 = vmatprep.subr.mxu0 0.0
          %972 = vmatpush1.msra.mxu0 0.0
          %973 = vmatprep.subr.mxu0 0.0
          %974 = vmatpush1.msra.mxu0 0.0
          %975 = vmatprep.subr.mxu0 0.0
          %976 = vmatpush1.msra.mxu0 0.0
          %977 = vmatprep.subr.mxu0 0.0
          %978 = vmatpush1.msra.mxu0 0.0
          %979 = vmatprep.subr.mxu0 0.0
          %980 = vmatpush1.msra.mxu0 0.0
          %981 = vmatprep.subr.mxu0 0.0
          %982 = vmatpush1.msra.mxu0 0.0
          %983 = vmatprep.subr.mxu0 0.0
          %984 = vmatpush1.msra.mxu0 0.0
          %985 = vmatprep.mubr.f32.mxu0 0.0
          %986 = vmatmul.mubr.f32.gmra.mrb[0].mxu0 %v919
          %v987 = vpop.f32.mrb[0].mxu0
          %v988 = vadd.f32 0.0, %v987
          %v989 = vpop.f32.mrb[0].mxu0
          %990 = vdwg.mxu0
          %v992 = vsel %vm342, %v739, 0
          %994 = vmatprep.subr.mxu0 0.0
          %995 = vmatpush1.msra.mxu0 %v767
          %996 = vmatprep.subr.mxu0 0.0
          %997 = vmatpush1.msra.mxu0 0.0
          %998 = vmatprep.subr.mxu0 0.0
          %999 = vmatpush1.msra.mxu0 0.0
          %1000 = vmatprep.subr.mxu0 0.0
          %1001 = vmatpush1.msra.mxu0 0.0
          %1002 = vmatprep.subr.mxu0 0.0
          %1003 = vmatpush1.msra.mxu0 0.0
          %1004 = vmatprep.subr.mxu0 0.0
          %1005 = vmatpush1.msra.mxu0 0.0
          %1006 = vmatprep.subr.mxu0 0.0
          %1007 = vmatpush1.msra.mxu0 0.0
          %1008 = vmatprep.subr.mxu0 0.0
          %1009 = vmatpush1.msra.mxu0 0.0
          %1010 = vmatprep.subr.mxu0 0.0
          %1011 = vmatpush1.msra.mxu0 0.0
          %1012 = vmatprep.subr.mxu0 0.0
          %1013 = vmatpush1.msra.mxu0 0.0
          %1014 = vmatprep.subr.mxu0 0.0
          %1015 = vmatpush1.msra.mxu0 0.0
          %1016 = vmatprep.subr.mxu0 0.0
          %1017 = vmatpush1.msra.mxu0 0.0
          %1018 = vmatprep.subr.mxu0 0.0
          %1019 = vmatpush1.msra.mxu0 0.0
          %1020 = vmatprep.subr.mxu0 0.0
          %1021 = vmatpush1.msra.mxu0 0.0
          %1022 = vmatprep.subr.mxu0 0.0
          %1023 = vmatpush1.msra.mxu0 0.0
          %1024 = vmatprep.subr.mxu0 0.0
          %1025 = vmatpush1.msra.mxu0 0.0
          %1026 = vmatprep.subr.mxu0 0.0
          %1027 = vmatpush1.msra.mxu0 0.0
          %1028 = vmatprep.subr.mxu0 0.0
          %1029 = vmatpush1.msra.mxu0 0.0
          %1030 = vmatprep.subr.mxu0 0.0
          %1031 = vmatpush1.msra.mxu0 0.0
          %1032 = vmatprep.subr.mxu0 0.0
          %1033 = vmatpush1.msra.mxu0 0.0
          %1034 = vmatprep.subr.mxu0 0.0
          %1035 = vmatpush1.msra.mxu0 0.0
          %1036 = vmatprep.subr.mxu0 0.0
          %1037 = vmatpush1.msra.mxu0 0.0
          %1038 = vmatprep.subr.mxu0 0.0
          %1039 = vmatpush1.msra.mxu0 0.0
          %1040 = vmatprep.subr.mxu0 0.0
          %1041 = vmatpush1.msra.mxu0 0.0
          %1042 = vmatprep.subr.mxu0 0.0
          %1043 = vmatpush1.msra.mxu0 0.0
          %1044 = vmatprep.subr.mxu0 0.0
          %1045 = vmatpush1.msra.mxu0 0.0
          %1046 = vmatprep.subr.mxu0 0.0
          %1047 = vmatpush1.msra.mxu0 0.0
          %1048 = vmatprep.subr.mxu0 0.0
          %1049 = vmatpush1.msra.mxu0 0.0
          %1050 = vmatprep.subr.mxu0 0.0
          %1051 = vmatpush1.msra.mxu0 0.0
          %1052 = vmatprep.subr.mxu0 0.0
          %1053 = vmatpush1.msra.mxu0 0.0
          %1054 = vmatprep.subr.mxu0 0.0
          %1055 = vmatpush1.msra.mxu0 0.0
          %1056 = vmatprep.subr.mxu0 0.0
          %1057 = vmatpush1.msra.mxu0 0.0
          %1058 = vmatprep.mubr.f32.mxu0 0.0
          %1059 = vmatmul.mubr.f32.gmra.mrb[0].mxu0 %v992
          %v1060 = vpop.f32.mrb[0].mxu0
          %v1061 = vadd.f32 0.0, %v1060
          %v1062 = vpop.f32.mrb[0].mxu0
          %1063 = vdwg.mxu0
          %v1064 = vadd.f32 %v768, %v842
          %v1065 = vadd.f32 %v769, %v915
          %v1066 = vadd.f32 %v770, %v988
          %v1067 = vadd.f32 %v771, %v1061
          %1068 = vst.msk [vmem:[#allocation5] sm:$0xff] %vm342, %v1064
          %1069 = vst.msk [vmem:[#allocation5 + $0x8] sm:$0xff] %vm342, %v1065
          %1070 = vst.msk [vmem:[#allocation5 + $0x10] sm:$0xff] %vm342, %v1066
          %1071 = vst.msk [vmem:[#allocation5 + $0x18] sm:$0xff] %vm342, %v1067
          %1072 = vst.msk [vmem:[#allocation2] sm:$0xff] %vm342, %v733
          %1073 = vst.msk [vmem:[#allocation2 + $0x8] sm:$0xff] %vm342, %v735
          %1074 = vst.msk [vmem:[#allocation2 + $0x10] sm:$0xff] %vm342, %v737
          %1075 = vst.msk [vmem:[#allocation2 + $0x18] sm:$0xff] %vm342, %v739
        $region48: #{tpu_custom_call.1} parent=31 // pred_fallthru
          _
        %v1076 = vld [vmem:[#allocation4] sm:$0xff]
        %v1077 = vld [vmem:[#allocation4 + $0x8] sm:$0xff]
        %v1078 = vld [vmem:[#allocation4 + $0x10] sm:$0xff]
        %v1079 = vld [vmem:[#allocation4 + $0x18] sm:$0xff]
        %v1080 = vrcp.pop %v1076
        %v1081 = vrcp.pop %v1077
        %v1082 = vrcp.pop %v1078
        %v1083 = vrcp.pop %v1079
        // Predicated region
        $region49: #{tpu_custom_call.1} parent=31 // pred_check
          %p1084 = pneg %p347
        $region50: #{tpu_custom_call.1} parent=31 // pred_check_branch
          %1086 = sbr.rel (%p1084) target = $region52
        $region51: #{tpu_custom_call.1} parent=31 // pred_region
          %v1087 = vld [vmem:[#allocation2] sm:$0xff]
          %v1088 = vld [vmem:[#allocation2 + $0x8] sm:$0xff]
          %v1089 = vld [vmem:[#allocation2 + $0x10] sm:$0xff]
          %v1090 = vld [vmem:[#allocation2 + $0x18] sm:$0xff]
          %1092 = vset.pattern.permute.xlu0 0
          %1093 = vperm.xlu0 %1092, %v1080
          %v1094 = vpop.permute.xlu0 %1093
          %1097 = vset.pattern.permute.xlu0 0
          %1098 = vperm.xlu0 %1097, %v1081
          %v1099 = vpop.permute.xlu0 %1098
          %1102 = vset.pattern.permute.xlu0 0
          %1103 = vperm.xlu0 %1102, %v1082
          %v1104 = vpop.permute.xlu0 %1103
          %1107 = vset.pattern.permute.xlu0 0
          %1108 = vperm.xlu0 %1107, %v1083
          %v1109 = vpop.permute.xlu0 %1108
          %v1111 = vmul.f32 %v1087, %v1094
          %v1112 = vmul.f32 %v1088, %v1099
          %v1113 = vmul.f32 %v1089, %v1104
          %v1114 = vmul.f32 %v1090, %v1109
          %v1115 = vsel %vm342, %v1111, 0.0
          %v1116 = vsel %vm342, %v1112, 0.0
          %v1117 = vadd.f32 %v1115, %v1116
          %v1118 = vsel %vm342, %v1113, 0.0
          %v1119 = vadd.f32 %v1117, %v1118
          %v1120 = vsel %vm342, %v1114, 0.0
          %v1121 = vadd.f32 %v1119, %v1120
          %v1122 = vrcp.pop 4.0
          %v1123 = vmul.f32 %v1121, %v1122
          %1124 = vst.msk [vmem:[%s322] sm:$0xff] %vm342, %v1123
        $region52: #{tpu_custom_call.1} parent=31 // pred_fallthru
          _
        %p1125 = scmp.lt.s32.totalorder %s324, 0
        // Predicated region
        $region53: #{tpu_custom_call.1} parent=31 // pred_check
          %p1126 = pneg %p1125
        $region54: #{tpu_custom_call.1} parent=31 // pred_check_branch
          %1128 = sbr.rel (%p1126) target = $region56
        $region55: #{tpu_custom_call.1} parent=31 // pred_region
          %1129 = vst.msk [vmem:[%s322] sm:$0xff] %vm342, 0.0
        $region56: #{tpu_custom_call.1} parent=31 // pred_fallthru
          _
        %v1130 = vld [vmem:[#allocation5] sm:$0xff]
        %v1131 = vld [vmem:[#allocation5 + $0x8] sm:$0xff]
        %v1132 = vld [vmem:[#allocation5 + $0x10] sm:$0xff]
        %v1133 = vld [vmem:[#allocation5 + $0x18] sm:$0xff]
        %1135 = vset.pattern.permute.xlu0 0
        %1136 = vperm.xlu0 %1135, %v1080
        %v1137 = vpop.permute.xlu0 %1136
        %1140 = vset.pattern.permute.xlu0 0
        %1141 = vperm.xlu0 %1140, %v1081
        %v1142 = vpop.permute.xlu0 %1141
        %1145 = vset.pattern.permute.xlu0 0
        %1146 = vperm.xlu0 %1145, %v1082
        %v1147 = vpop.permute.xlu0 %1146
        %1150 = vset.pattern.permute.xlu0 0
        %1151 = vperm.xlu0 %1150, %v1083
        %v1152 = vpop.permute.xlu0 %1151
        %v1154 = vmul.f32 %v1130, %v1137
        %v1155 = vmul.f32 %v1131, %v1142
        %v1156 = vmul.f32 %v1132, %v1147
        %v1157 = vmul.f32 %v1133, %v1152
        %1158 = vst.msk [vmem:[%s315] sm:$0xff] %vm342, %v1154
        %1160 = vrot.lane.b32.xlu0 %v1155, 8
        %v1161 = vpop.permute.xlu0 %1160
        %vm1163 = vcmask 130112
        %1164 = vst.msk [vmem:[%s315] sm:$0xff] %vm1163, %v1161
        %1166 = vrot.lane.b32.xlu0 %v1156, 16
        %v1167 = vpop.permute.xlu0 %1166
        %vm1169 = vcmask 195712
        %1170 = vst.msk [vmem:[%s315] sm:$0xff] %vm1169, %v1167
        %1172 = vrot.lane.b32.xlu0 %v1157, 24
        %v1173 = vpop.permute.xlu0 %1172
        %vm1175 = vcmask 261312
        %1176 = vst.msk [vmem:[%s315] sm:$0xff] %vm1175, %v1173
        %s1177 = sand.u32 %s130, 1
        %s1178 = scalar_lea.sflag [#allocation8], %s1177
        %s1179 = sand.u32 %s130, 1
        %s1180 = smul.addr %s1179, 8
        %s1181 = scalar_lea.vmem [#allocation12], %s1180
        %s1182 = sand.u32 %s158, 1
        %s1183 = scalar_lea.sflag [#allocation14], %s1182
        %s1184 = sand.u32 %s158, 1
        %s1185 = smul.addr %s1184, 8
        %s1186 = scalar_lea.vmem [#allocation13], %s1185
        // Predicated region
        $region57: #{tpu_custom_call.1} parent=31 // pred_check
          %p1187 = pneg %p140
        $region58: #{tpu_custom_call.1} parent=31 // pred_check_branch
          %1189 = sbr.rel (%p1187) target = $region60
        $region59: #{tpu_custom_call.1} parent=31 // pred_region
          %s1191 = ssub.s32 128, 128
          %1192 = vsyncadd %s1178, %s1191
          %s1193 = sadd.s32 %s33, %s32
          %s1194 = smul.addr %s1193, 128
          %s1195 = scalar_lea.hbm %s3, %s1194
          %s1197 = sshll.u32 %s1181, 4
          %s1198 = int_to_ptr.vmem [resolvable:$true] %s1197
          %1200 = dma.vmem_to_hbm [thread:$0]  %s1198, 128, %s1195, %s1178
        $region60: #{tpu_custom_call.1} parent=31 // pred_fallthru
          _
        // Predicated region
        $region61: #{tpu_custom_call.1} parent=31 // pred_check
          %p1201 = pneg %p168
        $region62: #{tpu_custom_call.1} parent=31 // pred_check_branch
          %1203 = sbr.rel (%p1201) target = $region64
        $region63: #{tpu_custom_call.1} parent=31 // pred_region
          %s1205 = ssub.s32 128, 128
          %1206 = vsyncadd %s1183, %s1205
          %s1207 = sadd.s32 %s33, %s32
          %s1208 = smul.addr %s1207, 128
          %s1209 = scalar_lea.hbm %s4, %s1208
          %s1211 = sshll.u32 %s1186, 4
          %s1212 = int_to_ptr.vmem [resolvable:$true] %s1211
          %1214 = dma.vmem_to_hbm [thread:$0]  %s1212, 128, %s1209, %s1183
        $region64: #{tpu_custom_call.1} parent=31 // pred_fallthru
          _
      $region32: #{tpu_custom_call.1} parent=5 // pred_fallthru
        _
      %p1215 = scmp.le.s32.totalorder 2, %s23
      // Predicated region
      $region65: #{tpu_custom_call.1} parent=5 // pred_check
        %p1216 = pneg %p1215
      $region66: #{tpu_custom_call.1} parent=5 // pred_check_branch
        %1218 = sbr.rel (%p1216) target = $region68
      $region67: #{tpu_custom_call.1} parent=5 // pred_region
        %s1219 = ssub.s32 %s23, 2
        // Predicated region
        $region69: #{tpu_custom_call.1} parent=67 // pred_check
          %p1220 = pneg %p146
        $region70: #{tpu_custom_call.1} parent=67 // pred_check_branch
          %1222 = sbr.rel (%p1220) target = $region72
        $region71: #{tpu_custom_call.1} parent=67 // pred_region
          %s1223 = sand.u32 %s131, 1
          %s1224 = scalar_lea.sflag [#allocation8], %s1223
          %s1225 = sand.u32 %s131, 1
          %s1226 = smul.addr %s1225, 8
          %s1227 = scalar_lea.vmem [#allocation12], %s1226
          %1228 = dma.done %s1224, 128
        $region72: #{tpu_custom_call.1} parent=67 // pred_fallthru
          _
        // Predicated region
        $region73: #{tpu_custom_call.1} parent=67 // pred_check
          %p1229 = pneg %p174
        $region74: #{tpu_custom_call.1} parent=67 // pred_check_branch
          %1231 = sbr.rel (%p1229) target = $region76
        $region75: #{tpu_custom_call.1} parent=67 // pred_region
          %s1232 = sand.u32 %s159, 1
          %s1233 = scalar_lea.sflag [#allocation14], %s1232
          %s1234 = sand.u32 %s159, 1
          %s1235 = smul.addr %s1234, 8
          %s1236 = scalar_lea.vmem [#allocation13], %s1235
          %1237 = dma.done %s1233, 128
        $region76: #{tpu_custom_call.1} parent=67 // pred_fallthru
          _
      $region68: #{tpu_custom_call.1} parent=5 // pred_fallthru
        _
    $region6: #{tpu_custom_call.1} parent=1 // loop_footer
      %s27 = sadd.s32 1, %s23
    $region7: #{tpu_custom_call.1} parent=1 // loop_footer_branch
      %22 = sbr.rel target = $region3
    $region8: #{tpu_custom_call.1} parent=1 // loop_exit
      _
    %1238 = vsyncpa [#allocation7], 1
    %s1239 = scalar_lea.sflag [#allocation7], 1
    %1240 = vsyncpa %s1239, 1
    %1241 = vsyncpa [#allocation10], 1
    %s1242 = scalar_lea.sflag [#allocation10], 1
    %1243 = vsyncpa %s1242, 1
    %1244 = vsyncpa [#allocation8], 1
    %s1245 = scalar_lea.sflag [#allocation8], 1
    %1246 = vsyncpa %s1245, 1
    %1247 = vsyncpa [#allocation14], 1
    %s1248 = scalar_lea.sflag [#allocation14], 1
    %1249 = vsyncpa %s1248, 1

</llo_original>
